<compile_context>
chip_gen: v7x
topology: tpu7x:2x2x1
jax: 0.10.0
libtpu: 0.0.40
codegen_flags: <defaults>
</compile_context>

<pallas_src>
import functools

import jax
import jax.numpy as jnp
from jax import lax
from jax.experimental import pallas as pl
from jax.experimental.pallas import tpu as pltpu


def _round_up(x, m):
    return (x + m - 1) // m * m


def _gru_chunk_kernel(x_ref, wih_t_ref, whh_t_ref, bih_ref, bhn_ref,
                      hT_ref, gi_scratch,
                      *, chunk, b_pad, h_pad, seq_len, mask_tail, unroll):
    """One grid step == `chunk` GRU time steps.

    x_ref       : (chunk*b_pad, I)   bf16, flattened timestep-major rows
    wih_t_ref   : (I, 3*h_pad)       bf16, gate-padded, lane-aligned gate slabs
    whh_t_ref   : (h_pad, 3*h_pad)   f32
    bih_ref     : (1, 3*h_pad)       f32, b_ih with b_hh's r/z slabs folded in
    bhn_ref     : (1, h_pad)         f32, b_hh n-slab (must stay inside r*(...))
    hT_ref      : (b_pad, h_pad)     f32, lane-dense output == carried hidden state
    gi_scratch  : (chunk*b_pad, 3*h_pad) f32, precomputed input projections
    """
    c = pl.program_id(0)
    Hp = h_pad
    Bp = b_pad

    @pl.when(c == 0)
    def _init():
        hT_ref[...] = jnp.zeros_like(hT_ref)          # h_0 = zeros

    # ---- Phase 1 (time-parallel): one big bf16 input projection, f32 acc. ----
    gi_scratch[...] = (
        jnp.dot(x_ref[...], wih_t_ref[...], preferred_element_type=jnp.float32)
        + bih_ref[...])

    # Hoist weight load and the n-gate bias broadcast out of the serial loop.
    whh_t = whh_t_ref[...]
    b_hn = jnp.broadcast_to(bhn_ref[...], (Bp, Hp))

    limit = seq_len - c * chunk                        # valid steps in this chunk

    # ---- Phase 2 (serial): the recurrence over the chunk. ----
    def step(t, h):
        off = pl.multiple_of(t * Bp, Bp)
        gi_t = gi_scratch[pl.ds(off, Bp), :]           # (Bp, 3Hp)
        gh = jnp.dot(h, whh_t, preferred_element_type=jnp.float32)

        # PyTorch gate order r, z, n; each gate in its own lane-aligned Hp slab.
        i_r = gi_t[:, 0:Hp]                            # includes b_ih_r + b_hh_r
        i_z = gi_t[:, Hp:2 * Hp]                       # includes b_ih_z + b_hh_z
        i_n = gi_t[:, 2 * Hp:3 * Hp]                   # includes b_ih_n only
        h_r = gh[:, 0:Hp]
        h_z = gh[:, Hp:2 * Hp]
        h_n = gh[:, 2 * Hp:3 * Hp]

        r = jax.nn.sigmoid(i_r + h_r)
        z = jax.nn.sigmoid(i_z + h_z)
        n = jnp.tanh(i_n + r * (h_n + b_hn))
        h_new = n + z * (h - n)                        # == (1 - z) * n + z * h
        if mask_tail:
            h_new = jnp.where(t < limit, h_new, h)     # ignore padded tail steps
        return h_new

    hT_ref[...] = lax.fori_loop(0, chunk, step, hT_ref[...], unroll=unroll)


def sequence_gru_forward(x, params, *, chunk=None, vmem_budget_bytes=24 << 20):
    """x: (T, B, I) float32.  Returns (B,) float32 == Linear(GRU(x)[-1])."""
    T, B, I = x.shape
    H = params["w_hh"].shape[1]
    f32 = jnp.float32
    cdt = jnp.bfloat16                                 # matmul-input dtype (x stream)

    Hp = _round_up(H, 128)                             # lane-align each gate slab
    Bp = _round_up(B, 8)                               # f32 sublane minimum

    # --- auto-size the time chunk from a VMEM budget (portable to v7x 64MiB). ---
    if chunk is None:
        fixed = 2 * (I * 3 * Hp * 2 + Hp * 3 * Hp * 4 + 4 * Hp * 4) + Bp * Hp * 4
        per_t = Bp * (3 * Hp * 4 + 2 * I * 2)          # gi rows (f32) + 2x bf16 x rows
        avail = max(vmem_budget_bytes - fixed, per_t)
        chunk = max(1, min(T, 64, avail // per_t))
    chunk = int(chunk)
    num_chunks = (T + chunk - 1) // chunk
    mask_tail = (T % chunk) != 0
    T_pad = num_chunks * chunk

    # --- Gate-padded, pre-transposed weights; fold b_hh r/z slabs into b_ih. ---
    w_ih = params["w_ih"].astype(f32)                  # (3H, I)
    w_hh = params["w_hh"].astype(f32)                  # (3H, H)
    b_ih = params["b_ih"].astype(f32)                  # (3H,)
    b_hh = params["b_hh"].astype(f32)                  # (3H,)

    wih_t = jnp.zeros((I, 3 * Hp), f32)
    whh_t = jnp.zeros((Hp, 3 * Hp), f32)
    bih = jnp.zeros((1, 3 * Hp), f32)
    bhn = jnp.zeros((1, Hp), f32)
    for g in range(3):
        wih_t = wih_t.at[:, g * Hp:g * Hp + H].set(w_ih[g * H:(g + 1) * H, :].T)
        whh_t = whh_t.at[:H, g * Hp:g * Hp + H].set(w_hh[g * H:(g + 1) * H, :].T)
        bias_g = b_ih[g * H:(g + 1) * H]
        if g < 2:                                      # r, z: safe to fold b_hh
            bias_g = bias_g + b_hh[g * H:(g + 1) * H]
        bih = bih.at[0, g * Hp:g * Hp + H].set(bias_g)
    bhn = bhn.at[0, :H].set(b_hh[2 * H:3 * H])
    wih_t = wih_t.astype(cdt)                          # bf16 for the MXU x-projection

    # --- Batch/time pad + bf16 cast; flatten x to timestep-major rows. ---
    if Bp == B and T_pad == T:
        x_flat = x.astype(cdt).reshape(T * B, I)       # no pad copy needed
    else:
        x_pad = jnp.zeros((T_pad, Bp, I), cdt).at[:T, :B, :].set(x.astype(cdt))
        x_flat = x_pad.reshape(T_pad * Bp, I)

    kernel = functools.partial(
        _gru_chunk_kernel, chunk=chunk, b_pad=Bp, h_pad=Hp,
        seq_len=T, mask_tail=mask_tail, unroll=min(chunk, 8))

    hT = pl.pallas_call(
        kernel,
        out_shape=jax.ShapeDtypeStruct((Bp, Hp), f32),
        grid_spec=pltpu.PrefetchScalarGridSpec(
            num_scalar_prefetch=0,
            grid=(num_chunks,),
            in_specs=[
                # chunk of flattened timestep rows (bf16)
                pl.BlockSpec((chunk * Bp, I), lambda c: (c, 0)),
                # weights / biases: resident every step (constant block index)
                pl.BlockSpec((I, 3 * Hp), lambda c: (0, 0)),
                pl.BlockSpec((Hp, 3 * Hp), lambda c: (0, 0)),
                pl.BlockSpec((1, 3 * Hp), lambda c: (0, 0)),
                pl.BlockSpec((1, Hp), lambda c: (0, 0)),
            ],
            out_specs=pl.BlockSpec((Bp, Hp), lambda c: (0, 0)),
            scratch_shapes=[
                pltpu.VMEM((chunk * Bp, 3 * Hp), f32),  # precomputed gi chunk
            ],
        ),
        compiler_params=pltpu.CompilerParams(
            dimension_semantics=("arbitrary",),        # time recurrence is serial
            vmem_limit_bytes=32 * 1024 * 1024,
        ),
    )(x_flat, wih_t, whh_t, bih, bhn)

    # Lane-dense kernel output; the trivial (H,1) Linear head runs in XLA.
    y = hT[:B, :H] @ params["w_lin"].T.astype(f32) + params["b_lin"].astype(f32)
    return y.reshape(-1)                               # (B,)


def sequence_gru_reference(x, params):
    """Pure-JAX f32 reference (lax.scan) mirroring torch.nn.GRU + Linear."""
    H = params["w_hh"].shape[1]
    w_ih, w_hh = params["w_ih"], params["w_hh"]
    b_ih, b_hh = params["b_ih"], params["b_hh"]
    hi = lax.Precision.HIGHEST

    def step(h, x_t):
        gi = jnp.dot(x_t, w_ih.T, precision=hi) + b_ih
        gh = jnp.dot(h, w_hh.T, precision=hi) + b_hh
        i_r, i_z, i_n = jnp.split(gi, 3, axis=-1)
        h_r, h_z, h_n = jnp.split(gh, 3, axis=-1)
        r = jax.nn.sigmoid(i_r + h_r)
        z = jax.nn.sigmoid(i_z + h_z)
        n = jnp.tanh(i_n + r * h_n)
        return (1.0 - z) * n + z * h, None

    B = x.shape[1]
    h0 = jnp.zeros((B, H), jnp.float32)
    h_last, _ = lax.scan(step, h0, x)
    y = jnp.dot(h_last, params["w_lin"].T, precision=hi) + params["b_lin"]
    return y.reshape(-1)


def init_params(key, input_size, hidden_size):
    """Deterministic init matching torch GRU/Linear parameter shapes."""
    k = jax.random.split(key, 6)
    s = 1.0 / jnp.sqrt(hidden_size)
    return {
        "w_ih": jax.random.uniform(k[0], (3 * hidden_size, input_size), jnp.float32, -s, s),
        "w_hh": jax.random.uniform(k[1], (3 * hidden_size, hidden_size), jnp.float32, -s, s),
        "b_ih": jax.random.uniform(k[2], (3 * hidden_size,), jnp.float32, -s, s),
        "b_hh": jax.random.uniform(k[3], (3 * hidden_size,), jnp.float32, -s, s),
        "w_lin": jax.random.uniform(k[4], (1, hidden_size), jnp.float32, -s, s),
        "b_lin": jax.random.uniform(k[5], (1,), jnp.float32, -s, s),
    }


if __name__ == "__main__":
    SEQ, BATCH, INPUT, HIDDEN = 8, 4, 16, 32

    key = jax.random.PRNGKey(0)
    kx, kp = jax.random.split(key)
    x = jax.random.normal(kx, (SEQ, BATCH, INPUT), dtype=jnp.float32)
    params = init_params(kp, INPUT, HIDDEN)

    fwd = jax.jit(sequence_gru_forward)
    y = jax.block_until_ready(fwd(x, params))

    y_ref = sequence_gru_reference(x, params)
    assert y.shape == (BATCH,)
    # Tolerance loosened per the perf review: the x-projection runs with bf16
    # MXU inputs (f32 accumulate); the recurrence and gate math stay f32.
    assert jnp.allclose(y, y_ref, atol=3e-2, rtol=3e-2), (y, y_ref)

    print("KERNEL_OK")
</pallas_src>

<mosaic_0001>
module attributes {stable_mosaic.version = 11 : i64} {
  func.func @_gru_chunk_kernel(%arg0: i32, %arg1: memref<64x16xbf16, #tpu.memory_space<vmem>>, %arg2: memref<16x384xbf16, #tpu.memory_space<vmem>>, %arg3: memref<128x384xf32, #tpu.memory_space<vmem>>, %arg4: memref<1x384xf32, #tpu.memory_space<vmem>>, %arg5: memref<1x128xf32, #tpu.memory_space<vmem>>, %arg6: memref<8x128xf32, #tpu.memory_space<vmem>>, %arg7: memref<64x384xf32, #tpu.memory_space<vmem>>) attributes {dimension_semantics = [#tpu.dimension_semantics<arbitrary>], iteration_bounds = array<i64: 1>, scalar_prefetch = 0 : i64, scratch_operands = 1 : i64, tpu.core_type = #tpu.core_type<tc>, window_params = [{transform_indices = @transform_0, window_bounds = array<i64: 64, 16>}, {pipeline_mode = #tpu.pipeline_mode<synchronous>, transform_indices = @transform_1, window_bounds = array<i64: 16, 384>}, {pipeline_mode = #tpu.pipeline_mode<synchronous>, transform_indices = @transform_2, window_bounds = array<i64: 128, 384>}, {pipeline_mode = #tpu.pipeline_mode<synchronous>, transform_indices = @transform_3, window_bounds = array<i64: 1, 384>}, {pipeline_mode = #tpu.pipeline_mode<synchronous>, transform_indices = @transform_4, window_bounds = array<i64: 1, 128>}, {pipeline_mode = #tpu.pipeline_mode<synchronous>, transform_indices = @transform_5, window_bounds = array<i64: 8, 128>}]} {
    %c0_i32 = arith.constant 0 : i32
    %0 = arith.cmpi eq, %arg0, %c0_i32 : i32
    %1 = arith.extui %0 : i1 to i32
    %c0_i32_0 = arith.constant 0 : i32
    %2 = arith.cmpi ne, %1, %c0_i32_0 : i32
    scf.if %2 {
      %cst_57 = arith.constant 0.000000e+00 : f32
      %256 = vector.broadcast %cst_57 : f32 to vector<8x128xf32>
      %c0_58 = arith.constant 0 : index
      %c0_59 = arith.constant 0 : index
      %257 = vector.load %arg6[%c0_58, %c0_59] : memref<8x128xf32, #tpu.memory_space<vmem>>, vector<8x128xf32>
      tpu.vector_store %arg6[%c0_58, %c0_59], %256 {strides = array<i32>} : memref<8x128xf32, #tpu.memory_space<vmem>>, vector<8x128xf32>,
    } else {
    }
    %c0 = arith.constant 0 : index
    %c0_1 = arith.constant 0 : index
    %3 = vector.load %arg1[%c0, %c0_1] : memref<64x16xbf16, #tpu.memory_space<vmem>>, vector<64x16xbf16>
    %c0_2 = arith.constant 0 : index
    %c0_3 = arith.constant 0 : index
    %4 = vector.load %arg2[%c0_2, %c0_3] : memref<16x384xbf16, #tpu.memory_space<vmem>>, vector<16x384xbf16>
    %cst = arith.constant dense<0.000000e+00> : vector<64x384xf32>
    %5 = tpu.matmul %3, %4, %cst {dimension_numbers = #tpu.dot_dimension_numbers<[1], [0], [0], [1], [0, 0, 1, 1], [], []>} : vector<64x16xbf16>, vector<16x384xbf16>, vector<64x384xf32> -> vector<64x384xf32>
    %c0_4 = arith.constant 0 : index
    %c0_5 = arith.constant 0 : index
    %6 = vector.load %arg4[%c0_4, %c0_5] : memref<1x384xf32, #tpu.memory_space<vmem>>, vector<1x384xf32>
    %7 = vector.broadcast %6 : vector<1x384xf32> to vector<64x384xf32>
    %8 = arith.addf %5, %7 : vector<64x384xf32>
    %c0_6 = arith.constant 0 : index
    %c0_7 = arith.constant 0 : index
    %9 = vector.load %arg7[%c0_6, %c0_7] : memref<64x384xf32, #tpu.memory_space<vmem>>, vector<64x384xf32>
    tpu.vector_store %arg7[%c0_6, %c0_7], %8 {strides = array<i32>} : memref<64x384xf32, #tpu.memory_space<vmem>>, vector<64x384xf32>,
    %c0_8 = arith.constant 0 : index
    %c0_9 = arith.constant 0 : index
    %10 = vector.load %arg3[%c0_8, %c0_9] : memref<128x384xf32, #tpu.memory_space<vmem>>, vector<128x384xf32>
    %c0_10 = arith.constant 0 : index
    %c0_11 = arith.constant 0 : index
    %11 = vector.load %arg5[%c0_10, %c0_11] : memref<1x128xf32, #tpu.memory_space<vmem>>, vector<1x128xf32>
    %12 = vector.shape_cast %11 : vector<1x128xf32> to vector<1x128xf32>
    %13 = vector.broadcast %12 : vector<1x128xf32> to vector<8x128xf32>
    %c0_12 = arith.constant 0 : index
    %c0_13 = arith.constant 0 : index
    %14 = vector.load %arg6[%c0_12, %c0_13] : memref<8x128xf32, #tpu.memory_space<vmem>>, vector<8x128xf32>
    %c0_i32_14 = arith.constant 0 : i32
    %c8_i32 = arith.constant 8 : i32
    %15 = arith.muli %c0_i32_14, %c8_i32 : i32
    %16 = tpu.assume_multiple %15, 8 : i32
    %17 = arith.index_cast %16 : i32 to index
    %c0_15 = arith.constant 0 : index
    %18 = vector.load %arg7[%17, %c0_15] : memref<64x384xf32, #tpu.memory_space<vmem>>, vector<8x384xf32>
    %cst_16 = arith.constant dense<0.000000e+00> : vector<8x384xf32>
    %19 = tpu.matmul %14, %10, %cst_16 {dimension_numbers = #tpu.dot_dimension_numbers<[1], [0], [0], [1], [0, 0, 1, 1], [], []>} : vector<8x128xf32>, vector<128x384xf32>, vector<8x384xf32> -> vector<8x384xf32>
    %20 = vector.extract_strided_slice %18 {offsets = [0, 0], sizes = [8, 128], strides = [1, 1]} : vector<8x384xf32> to vector<8x128xf32>
    %21 = vector.extract_strided_slice %18 {offsets = [0, 128], sizes = [8, 128], strides = [1, 1]} : vector<8x384xf32> to vector<8x128xf32>
    %22 = vector.extract_strided_slice %18 {offsets = [0, 256], sizes = [8, 128], strides = [1, 1]} : vector<8x384xf32> to vector<8x128xf32>
    %23 = vector.extract_strided_slice %19 {offsets = [0, 0], sizes = [8, 128], strides = [1, 1]} : vector<8x384xf32> to vector<8x128xf32>
    %24 = vector.extract_strided_slice %19 {offsets = [0, 128], sizes = [8, 128], strides = [1, 1]} : vector<8x384xf32> to vector<8x128xf32>
    %25 = vector.extract_strided_slice %19 {offsets = [0, 256], sizes = [8, 128], strides = [1, 1]} : vector<8x384xf32> to vector<8x128xf32>
    %26 = arith.addf %20, %23 : vector<8x128xf32>
    %27 = arith.negf %26 : vector<8x128xf32>
    %28 = math.exp %27 : vector<8x128xf32>
    %cst_17 = arith.constant 1.000000e+00 : f32
    %29 = vector.broadcast %cst_17 : f32 to vector<8x128xf32>
    %30 = arith.addf %29, %28 : vector<8x128xf32>
    %31 = arith.divf %29, %30 : vector<8x128xf32>
    %32 = arith.addf %21, %24 : vector<8x128xf32>
    %33 = arith.negf %32 : vector<8x128xf32>
    %34 = math.exp %33 : vector<8x128xf32>
    %cst_18 = arith.constant 1.000000e+00 : f32
    %35 = vector.broadcast %cst_18 : f32 to vector<8x128xf32>
    %36 = arith.addf %35, %34 : vector<8x128xf32>
    %37 = arith.divf %35, %36 : vector<8x128xf32>
    %38 = arith.addf %25, %13 : vector<8x128xf32>
    %39 = arith.mulf %31, %38 : vector<8x128xf32>
    %40 = arith.addf %22, %39 : vector<8x128xf32>
    %41 = math.tanh %40 : vector<8x128xf32>
    %42 = arith.subf %14, %41 : vector<8x128xf32>
    %43 = arith.mulf %37, %42 : vector<8x128xf32>
    %44 = arith.addf %41, %43 : vector<8x128xf32>
    %c1_i32 = arith.constant 1 : i32
    %c8_i32_19 = arith.constant 8 : i32
    %45 = arith.muli %c1_i32, %c8_i32_19 : i32
    %46 = tpu.assume_multiple %45, 8 : i32
    %47 = arith.index_cast %46 : i32 to index
    %c0_20 = arith.constant 0 : index
    %48 = vector.load %arg7[%47, %c0_20] : memref<64x384xf32, #tpu.memory_space<vmem>>, vector<8x384xf32>
    %cst_21 = arith.constant dense<0.000000e+00> : vector<8x384xf32>
    %49 = tpu.matmul %44, %10, %cst_21 {dimension_numbers = #tpu.dot_dimension_numbers<[1], [0], [0], [1], [0, 0, 1, 1], [], []>} : vector<8x128xf32>, vector<128x384xf32>, vector<8x384xf32> -> vector<8x384xf32>
    %50 = vector.extract_strided_slice %48 {offsets = [0, 0], sizes = [8, 128], strides = [1, 1]} : vector<8x384xf32> to vector<8x128xf32>
    %51 = vector.extract_strided_slice %48 {offsets = [0, 128], sizes = [8, 128], strides = [1, 1]} : vector<8x384xf32> to vector<8x128xf32>
    %52 = vector.extract_strided_slice %48 {offsets = [0, 256], sizes = [8, 128], strides = [1, 1]} : vector<8x384xf32> to vector<8x128xf32>
    %53 = vector.extract_strided_slice %49 {offsets = [0, 0], sizes = [8, 128], strides = [1, 1]} : vector<8x384xf32> to vector<8x128xf32>
    %54 = vector.extract_strided_slice %49 {offsets = [0, 128], sizes = [8, 128], strides = [1, 1]} : vector<8x384xf32> to vector<8x128xf32>
    %55 = vector.extract_strided_slice %49 {offsets = [0, 256], sizes = [8, 128], strides = [1, 1]} : vector<8x384xf32> to vector<8x128xf32>
    %56 = arith.addf %50, %53 : vector<8x128xf32>
    %57 = arith.negf %56 : vector<8x128xf32>
    %58 = math.exp %57 : vector<8x128xf32>
    %cst_22 = arith.constant 1.000000e+00 : f32
    %59 = vector.broadcast %cst_22 : f32 to vector<8x128xf32>
    %60 = arith.addf %59, %58 : vector<8x128xf32>
    %61 = arith.divf %59, %60 : vector<8x128xf32>
    %62 = arith.addf %51, %54 : vector<8x128xf32>
    %63 = arith.negf %62 : vector<8x128xf32>
    %64 = math.exp %63 : vector<8x128xf32>
    %cst_23 = arith.constant 1.000000e+00 : f32
    %65 = vector.broadcast %cst_23 : f32 to vector<8x128xf32>
    %66 = arith.addf %65, %64 : vector<8x128xf32>
    %67 = arith.divf %65, %66 : vector<8x128xf32>
    %68 = arith.addf %55, %13 : vector<8x128xf32>
    %69 = arith.mulf %61, %68 : vector<8x128xf32>
    %70 = arith.addf %52, %69 : vector<8x128xf32>
    %71 = math.tanh %70 : vector<8x128xf32>
    %72 = arith.subf %44, %71 : vector<8x128xf32>
    %73 = arith.mulf %67, %72 : vector<8x128xf32>
    %74 = arith.addf %71, %73 : vector<8x128xf32>
    %c2_i32 = arith.constant 2 : i32
    %c8_i32_24 = arith.constant 8 : i32
    %75 = arith.muli %c2_i32, %c8_i32_24 : i32
    %76 = tpu.assume_multiple %75, 8 : i32
    %77 = arith.index_cast %76 : i32 to index
    %c0_25 = arith.constant 0 : index
    %78 = vector.load %arg7[%77, %c0_25] : memref<64x384xf32, #tpu.memory_space<vmem>>, vector<8x384xf32>
    %cst_26 = arith.constant dense<0.000000e+00> : vector<8x384xf32>
    %79 = tpu.matmul %74, %10, %cst_26 {dimension_numbers = #tpu.dot_dimension_numbers<[1], [0], [0], [1], [0, 0, 1, 1], [], []>} : vector<8x128xf32>, vector<128x384xf32>, vector<8x384xf32> -> vector<8x384xf32>
    %80 = vector.extract_strided_slice %78 {offsets = [0, 0], sizes = [8, 128], strides = [1, 1]} : vector<8x384xf32> to vector<8x128xf32>
    %81 = vector.extract_strided_slice %78 {offsets = [0, 128], sizes = [8, 128], strides = [1, 1]} : vector<8x384xf32> to vector<8x128xf32>
    %82 = vector.extract_strided_slice %78 {offsets = [0, 256], sizes = [8, 128], strides = [1, 1]} : vector<8x384xf32> to vector<8x128xf32>
    %83 = vector.extract_strided_slice %79 {offsets = [0, 0], sizes = [8, 128], strides = [1, 1]} : vector<8x384xf32> to vector<8x128xf32>
    %84 = vector.extract_strided_slice %79 {offsets = [0, 128], sizes = [8, 128], strides = [1, 1]} : vector<8x384xf32> to vector<8x128xf32>
    %85 = vector.extract_strided_slice %79 {offsets = [0, 256], sizes = [8, 128], strides = [1, 1]} : vector<8x384xf32> to vector<8x128xf32>
    %86 = arith.addf %80, %83 : vector<8x128xf32>
    %87 = arith.negf %86 : vector<8x128xf32>
    %88 = math.exp %87 : vector<8x128xf32>
    %cst_27 = arith.constant 1.000000e+00 : f32
    %89 = vector.broadcast %cst_27 : f32 to vector<8x128xf32>
    %90 = arith.addf %89, %88 : vector<8x128xf32>
    %91 = arith.divf %89, %90 : vector<8x128xf32>
    %92 = arith.addf %81, %84 : vector<8x128xf32>
    %93 = arith.negf %92 : vector<8x128xf32>
    %94 = math.exp %93 : vector<8x128xf32>
    %cst_28 = arith.constant 1.000000e+00 : f32
    %95 = vector.broadcast %cst_28 : f32 to vector<8x128xf32>
    %96 = arith.addf %95, %94 : vector<8x128xf32>
    %97 = arith.divf %95, %96 : vector<8x128xf32>
    %98 = arith.addf %85, %13 : vector<8x128xf32>
    %99 = arith.mulf %91, %98 : vector<8x128xf32>
    %100 = arith.addf %82, %99 : vector<8x128xf32>
    %101 = math.tanh %100 : vector<8x128xf32>
    %102 = arith.subf %74, %101 : vector<8x128xf32>
    %103 = arith.mulf %97, %102 : vector<8x128xf32>
    %104 = arith.addf %101, %103 : vector<8x128xf32>
    %c3_i32 = arith.constant 3 : i32
    %c8_i32_29 = arith.constant 8 : i32
    %105 = arith.muli %c3_i32, %c8_i32_29 : i32
    %106 = tpu.assume_multiple %105, 8 : i32
    %107 = arith.index_cast %106 : i32 to index
    %c0_30 = arith.constant 0 : index
    %108 = vector.load %arg7[%107, %c0_30] : memref<64x384xf32, #tpu.memory_space<vmem>>, vector<8x384xf32>
    %cst_31 = arith.constant dense<0.000000e+00> : vector<8x384xf32>
    %109 = tpu.matmul %104, %10, %cst_31 {dimension_numbers = #tpu.dot_dimension_numbers<[1], [0], [0], [1], [0, 0, 1, 1], [], []>} : vector<8x128xf32>, vector<128x384xf32>, vector<8x384xf32> -> vector<8x384xf32>
    %110 = vector.extract_strided_slice %108 {offsets = [0, 0], sizes = [8, 128], strides = [1, 1]} : vector<8x384xf32> to vector<8x128xf32>
    %111 = vector.extract_strided_slice %108 {offsets = [0, 128], sizes = [8, 128], strides = [1, 1]} : vector<8x384xf32> to vector<8x128xf32>
    %112 = vector.extract_strided_slice %108 {offsets = [0, 256], sizes = [8, 128], strides = [1, 1]} : vector<8x384xf32> to vector<8x128xf32>
    %113 = vector.extract_strided_slice %109 {offsets = [0, 0], sizes = [8, 128], strides = [1, 1]} : vector<8x384xf32> to vector<8x128xf32>
    %114 = vector.extract_strided_slice %109 {offsets = [0, 128], sizes = [8, 128], strides = [1, 1]} : vector<8x384xf32> to vector<8x128xf32>
    %115 = vector.extract_strided_slice %109 {offsets = [0, 256], sizes = [8, 128], strides = [1, 1]} : vector<8x384xf32> to vector<8x128xf32>
    %116 = arith.addf %110, %113 : vector<8x128xf32>
    %117 = arith.negf %116 : vector<8x128xf32>
    %118 = math.exp %117 : vector<8x128xf32>
    %cst_32 = arith.constant 1.000000e+00 : f32
    %119 = vector.broadcast %cst_32 : f32 to vector<8x128xf32>
    %120 = arith.addf %119, %118 : vector<8x128xf32>
    %121 = arith.divf %119, %120 : vector<8x128xf32>
    %122 = arith.addf %111, %114 : vector<8x128xf32>
    %123 = arith.negf %122 : vector<8x128xf32>
    %124 = math.exp %123 : vector<8x128xf32>
    %cst_33 = arith.constant 1.000000e+00 : f32
    %125 = vector.broadcast %cst_33 : f32 to vector<8x128xf32>
    %126 = arith.addf %125, %124 : vector<8x128xf32>
    %127 = arith.divf %125, %126 : vector<8x128xf32>
    %128 = arith.addf %115, %13 : vector<8x128xf32>
    %129 = arith.mulf %121, %128 : vector<8x128xf32>
    %130 = arith.addf %112, %129 : vector<8x128xf32>
    %131 = math.tanh %130 : vector<8x128xf32>
    %132 = arith.subf %104, %131 : vector<8x128xf32>
    %133 = arith.mulf %127, %132 : vector<8x128xf32>
    %134 = arith.addf %131, %133 : vector<8x128xf32>
    %c4_i32 = arith.constant 4 : i32
    %c8_i32_34 = arith.constant 8 : i32
    %135 = arith.muli %c4_i32, %c8_i32_34 : i32
    %136 = tpu.assume_multiple %135, 8 : i32
    %137 = arith.index_cast %136 : i32 to index
    %c0_35 = arith.constant 0 : index
    %138 = vector.load %arg7[%137, %c0_35] : memref<64x384xf32, #tpu.memory_space<vmem>>, vector<8x384xf32>
    %cst_36 = arith.constant dense<0.000000e+00> : vector<8x384xf32>
    %139 = tpu.matmul %134, %10, %cst_36 {dimension_numbers = #tpu.dot_dimension_numbers<[1], [0], [0], [1], [0, 0, 1, 1], [], []>} : vector<8x128xf32>, vector<128x384xf32>, vector<8x384xf32> -> vector<8x384xf32>
    %140 = vector.extract_strided_slice %138 {offsets = [0, 0], sizes = [8, 128], strides = [1, 1]} : vector<8x384xf32> to vector<8x128xf32>
    %141 = vector.extract_strided_slice %138 {offsets = [0, 128], sizes = [8, 128], strides = [1, 1]} : vector<8x384xf32> to vector<8x128xf32>
    %142 = vector.extract_strided_slice %138 {offsets = [0, 256], sizes = [8, 128], strides = [1, 1]} : vector<8x384xf32> to vector<8x128xf32>
    %143 = vector.extract_strided_slice %139 {offsets = [0, 0], sizes = [8, 128], strides = [1, 1]} : vector<8x384xf32> to vector<8x128xf32>
    %144 = vector.extract_strided_slice %139 {offsets = [0, 128], sizes = [8, 128], strides = [1, 1]} : vector<8x384xf32> to vector<8x128xf32>
    %145 = vector.extract_strided_slice %139 {offsets = [0, 256], sizes = [8, 128], strides = [1, 1]} : vector<8x384xf32> to vector<8x128xf32>
    %146 = arith.addf %140, %143 : vector<8x128xf32>
    %147 = arith.negf %146 : vector<8x128xf32>
    %148 = math.exp %147 : vector<8x128xf32>
    %cst_37 = arith.constant 1.000000e+00 : f32
    %149 = vector.broadcast %cst_37 : f32 to vector<8x128xf32>
    %150 = arith.addf %149, %148 : vector<8x128xf32>
    %151 = arith.divf %149, %150 : vector<8x128xf32>
    %152 = arith.addf %141, %144 : vector<8x128xf32>
    %153 = arith.negf %152 : vector<8x128xf32>
    %154 = math.exp %153 : vector<8x128xf32>
    %cst_38 = arith.constant 1.000000e+00 : f32
    %155 = vector.broadcast %cst_38 : f32 to vector<8x128xf32>
    %156 = arith.addf %155, %154 : vector<8x128xf32>
    %157 = arith.divf %155, %156 : vector<8x128xf32>
    %158 = arith.addf %145, %13 : vector<8x128xf32>
    %159 = arith.mulf %151, %158 : vector<8x128xf32>
    %160 = arith.addf %142, %159 : vector<8x128xf32>
    %161 = math.tanh %160 : vector<8x128xf32>
    %162 = arith.subf %134, %161 : vector<8x128xf32>
    %163 = arith.mulf %157, %162 : vector<8x128xf32>
    %164 = arith.addf %161, %163 : vector<8x128xf32>
    %c5_i32 = arith.constant 5 : i32
    %c8_i32_39 = arith.constant 8 : i32
    %165 = arith.muli %c5_i32, %c8_i32_39 : i32
    %166 = tpu.assume_multiple %165, 8 : i32
    %167 = arith.index_cast %166 : i32 to index
    %c0_40 = arith.constant 0 : index
    %168 = vector.load %arg7[%167, %c0_40] : memref<64x384xf32, #tpu.memory_space<vmem>>, vector<8x384xf32>
    %cst_41 = arith.constant dense<0.000000e+00> : vector<8x384xf32>
    %169 = tpu.matmul %164, %10, %cst_41 {dimension_numbers = #tpu.dot_dimension_numbers<[1], [0], [0], [1], [0, 0, 1, 1], [], []>} : vector<8x128xf32>, vector<128x384xf32>, vector<8x384xf32> -> vector<8x384xf32>
    %170 = vector.extract_strided_slice %168 {offsets = [0, 0], sizes = [8, 128], strides = [1, 1]} : vector<8x384xf32> to vector<8x128xf32>
    %171 = vector.extract_strided_slice %168 {offsets = [0, 128], sizes = [8, 128], strides = [1, 1]} : vector<8x384xf32> to vector<8x128xf32>
    %172 = vector.extract_strided_slice %168 {offsets = [0, 256], sizes = [8, 128], strides = [1, 1]} : vector<8x384xf32> to vector<8x128xf32>
    %173 = vector.extract_strided_slice %169 {offsets = [0, 0], sizes = [8, 128], strides = [1, 1]} : vector<8x384xf32> to vector<8x128xf32>
    %174 = vector.extract_strided_slice %169 {offsets = [0, 128], sizes = [8, 128], strides = [1, 1]} : vector<8x384xf32> to vector<8x128xf32>
    %175 = vector.extract_strided_slice %169 {offsets = [0, 256], sizes = [8, 128], strides = [1, 1]} : vector<8x384xf32> to vector<8x128xf32>
    %176 = arith.addf %170, %173 : vector<8x128xf32>
    %177 = arith.negf %176 : vector<8x128xf32>
    %178 = math.exp %177 : vector<8x128xf32>
    %cst_42 = arith.constant 1.000000e+00 : f32
    %179 = vector.broadcast %cst_42 : f32 to vector<8x128xf32>
    %180 = arith.addf %179, %178 : vector<8x128xf32>
    %181 = arith.divf %179, %180 : vector<8x128xf32>
    %182 = arith.addf %171, %174 : vector<8x128xf32>
    %183 = arith.negf %182 : vector<8x128xf32>
    %184 = math.exp %183 : vector<8x128xf32>
    %cst_43 = arith.constant 1.000000e+00 : f32
    %185 = vector.broadcast %cst_43 : f32 to vector<8x128xf32>
    %186 = arith.addf %185, %184 : vector<8x128xf32>
    %187 = arith.divf %185, %186 : vector<8x128xf32>
    %188 = arith.addf %175, %13 : vector<8x128xf32>
    %189 = arith.mulf %181, %188 : vector<8x128xf32>
    %190 = arith.addf %172, %189 : vector<8x128xf32>
    %191 = math.tanh %190 : vector<8x128xf32>
    %192 = arith.subf %164, %191 : vector<8x128xf32>
    %193 = arith.mulf %187, %192 : vector<8x128xf32>
    %194 = arith.addf %191, %193 : vector<8x128xf32>
    %c6_i32 = arith.constant 6 : i32
    %c8_i32_44 = arith.constant 8 : i32
    %195 = arith.muli %c6_i32, %c8_i32_44 : i32
    %196 = tpu.assume_multiple %195, 8 : i32
    %197 = arith.index_cast %196 : i32 to index
    %c0_45 = arith.constant 0 : index
    %198 = vector.load %arg7[%197, %c0_45] : memref<64x384xf32, #tpu.memory_space<vmem>>, vector<8x384xf32>
    %cst_46 = arith.constant dense<0.000000e+00> : vector<8x384xf32>
    %199 = tpu.matmul %194, %10, %cst_46 {dimension_numbers = #tpu.dot_dimension_numbers<[1], [0], [0], [1], [0, 0, 1, 1], [], []>} : vector<8x128xf32>, vector<128x384xf32>, vector<8x384xf32> -> vector<8x384xf32>
    %200 = vector.extract_strided_slice %198 {offsets = [0, 0], sizes = [8, 128], strides = [1, 1]} : vector<8x384xf32> to vector<8x128xf32>
    %201 = vector.extract_strided_slice %198 {offsets = [0, 128], sizes = [8, 128], strides = [1, 1]} : vector<8x384xf32> to vector<8x128xf32>
    %202 = vector.extract_strided_slice %198 {offsets = [0, 256], sizes = [8, 128], strides = [1, 1]} : vector<8x384xf32> to vector<8x128xf32>
    %203 = vector.extract_strided_slice %199 {offsets = [0, 0], sizes = [8, 128], strides = [1, 1]} : vector<8x384xf32> to vector<8x128xf32>
    %204 = vector.extract_strided_slice %199 {offsets = [0, 128], sizes = [8, 128], strides = [1, 1]} : vector<8x384xf32> to vector<8x128xf32>
    %205 = vector.extract_strided_slice %199 {offsets = [0, 256], sizes = [8, 128], strides = [1, 1]} : vector<8x384xf32> to vector<8x128xf32>
    %206 = arith.addf %200, %203 : vector<8x128xf32>
    %207 = arith.negf %206 : vector<8x128xf32>
    %208 = math.exp %207 : vector<8x128xf32>
    %cst_47 = arith.constant 1.000000e+00 : f32
    %209 = vector.broadcast %cst_47 : f32 to vector<8x128xf32>
    %210 = arith.addf %209, %208 : vector<8x128xf32>
    %211 = arith.divf %209, %210 : vector<8x128xf32>
    %212 = arith.addf %201, %204 : vector<8x128xf32>
    %213 = arith.negf %212 : vector<8x128xf32>
    %214 = math.exp %213 : vector<8x128xf32>
    %cst_48 = arith.constant 1.000000e+00 : f32
    %215 = vector.broadcast %cst_48 : f32 to vector<8x128xf32>
    %216 = arith.addf %215, %214 : vector<8x128xf32>
    %217 = arith.divf %215, %216 : vector<8x128xf32>
    %218 = arith.addf %205, %13 : vector<8x128xf32>
    %219 = arith.mulf %211, %218 : vector<8x128xf32>
    %220 = arith.addf %202, %219 : vector<8x128xf32>
    %221 = math.tanh %220 : vector<8x128xf32>
    %222 = arith.subf %194, %221 : vector<8x128xf32>
    %223 = arith.mulf %217, %222 : vector<8x128xf32>
    %224 = arith.addf %221, %223 : vector<8x128xf32>
    %c7_i32 = arith.constant 7 : i32
    %c8_i32_49 = arith.constant 8 : i32
    %225 = arith.muli %c7_i32, %c8_i32_49 : i32
    %226 = tpu.assume_multiple %225, 8 : i32
    %227 = arith.index_cast %226 : i32 to index
    %c0_50 = arith.constant 0 : index
    %228 = vector.load %arg7[%227, %c0_50] : memref<64x384xf32, #tpu.memory_space<vmem>>, vector<8x384xf32>
    %cst_51 = arith.constant dense<0.000000e+00> : vector<8x384xf32>
    %229 = tpu.matmul %224, %10, %cst_51 {dimension_numbers = #tpu.dot_dimension_numbers<[1], [0], [0], [1], [0, 0, 1, 1], [], []>} : vector<8x128xf32>, vector<128x384xf32>, vector<8x384xf32> -> vector<8x384xf32>
    %230 = vector.extract_strided_slice %228 {offsets = [0, 0], sizes = [8, 128], strides = [1, 1]} : vector<8x384xf32> to vector<8x128xf32>
    %231 = vector.extract_strided_slice %228 {offsets = [0, 128], sizes = [8, 128], strides = [1, 1]} : vector<8x384xf32> to vector<8x128xf32>
    %232 = vector.extract_strided_slice %228 {offsets = [0, 256], sizes = [8, 128], strides = [1, 1]} : vector<8x384xf32> to vector<8x128xf32>
    %233 = vector.extract_strided_slice %229 {offsets = [0, 0], sizes = [8, 128], strides = [1, 1]} : vector<8x384xf32> to vector<8x128xf32>
    %234 = vector.extract_strided_slice %229 {offsets = [0, 128], sizes = [8, 128], strides = [1, 1]} : vector<8x384xf32> to vector<8x128xf32>
    %235 = vector.extract_strided_slice %229 {offsets = [0, 256], sizes = [8, 128], strides = [1, 1]} : vector<8x384xf32> to vector<8x128xf32>
    %236 = arith.addf %230, %233 : vector<8x128xf32>
    %237 = arith.negf %236 : vector<8x128xf32>
    %238 = math.exp %237 : vector<8x128xf32>
    %cst_52 = arith.constant 1.000000e+00 : f32
    %239 = vector.broadcast %cst_52 : f32 to vector<8x128xf32>
    %240 = arith.addf %239, %238 : vector<8x128xf32>
    %241 = arith.divf %239, %240 : vector<8x128xf32>
    %242 = arith.addf %231, %234 : vector<8x128xf32>
    %243 = arith.negf %242 : vector<8x128xf32>
    %244 = math.exp %243 : vector<8x128xf32>
    %cst_53 = arith.constant 1.000000e+00 : f32
    %245 = vector.broadcast %cst_53 : f32 to vector<8x128xf32>
    %246 = arith.addf %245, %244 : vector<8x128xf32>
    %247 = arith.divf %245, %246 : vector<8x128xf32>
    %248 = arith.addf %235, %13 : vector<8x128xf32>
    %249 = arith.mulf %241, %248 : vector<8x128xf32>
    %250 = arith.addf %232, %249 : vector<8x128xf32>
    %251 = math.tanh %250 : vector<8x128xf32>
    %252 = arith.subf %224, %251 : vector<8x128xf32>
    %253 = arith.mulf %247, %252 : vector<8x128xf32>
    %254 = arith.addf %251, %253 : vector<8x128xf32>
    %c8_i32_54 = arith.constant 8 : i32
    %c0_55 = arith.constant 0 : index
    %c0_56 = arith.constant 0 : index
    %255 = vector.load %arg6[%c0_55, %c0_56] : memref<8x128xf32, #tpu.memory_space<vmem>>, vector<8x128xf32>
    tpu.vector_store %arg6[%c0_55, %c0_56], %254 {strides = array<i32>} : memref<8x128xf32, #tpu.memory_space<vmem>>, vector<8x128xf32>,
    return
  }
  func.func @transform_0(%arg0: i32) -> (i32, i32) {
    %c0_i32 = arith.constant 0 : i32
    %c0_i32_0 = arith.constant 0 : i32
    return %arg0, %c0_i32 : i32, i32
  }
  func.func @transform_1(%arg0: i32) -> (i32, i32) {
    %c0_i32 = arith.constant 0 : i32
    %c0_i32_0 = arith.constant 0 : i32
    %c0_i32_1 = arith.constant 0 : i32
    return %c0_i32, %c0_i32_0 : i32, i32
  }
  func.func @transform_2(%arg0: i32) -> (i32, i32) {
    %c0_i32 = arith.constant 0 : i32
    %c0_i32_0 = arith.constant 0 : i32
    %c0_i32_1 = arith.constant 0 : i32
    return %c0_i32, %c0_i32_0 : i32, i32
  }
  func.func @transform_3(%arg0: i32) -> (i32, i32) {
    %c0_i32 = arith.constant 0 : i32
    %c0_i32_0 = arith.constant 0 : i32
    %c0_i32_1 = arith.constant 0 : i32
    return %c0_i32, %c0_i32_0 : i32, i32
  }
  func.func @transform_4(%arg0: i32) -> (i32, i32) {
    %c0_i32 = arith.constant 0 : i32
    %c0_i32_0 = arith.constant 0 : i32
    %c0_i32_1 = arith.constant 0 : i32
    return %c0_i32, %c0_i32_0 : i32, i32
  }
  func.func @transform_5(%arg0: i32) -> (i32, i32) {
    %c0_i32 = arith.constant 0 : i32
    %c0_i32_0 = arith.constant 0 : i32
    %c0_i32_1 = arith.constant 0 : i32
    return %c0_i32, %c0_i32_0 : i32, i32
  }
}

</mosaic_0001>

<llo_original>
// kernel: sequence_gru_forward.1
$region0: #{sequence_gru_forward.1}
  #allocation0 [shape = 'u32[]', space=smem, size = 0x4, offset = 0x4, fixed_abs, tag = 'smem constant byte address 0x4 - core index']
  #allocation1 [shape = 'u32[144,128]{1,0:T(1,128)}', space=vmem, size = 0x12000, scoped, tag = 'internal scratch']
  #allocation2 [shape = 'f32[64,384]{1,0:T(8,128)}', space=vmem, size = 0x18000, scoped, tag = 'scratch operand']
  %s0 = inlined_call_operand.vmem [shape: bf16[64,16], index: 0, kind: input, shape index: {}]
  %s1 = inlined_call_operand.vmem [shape: bf16[16,384], index: 1, kind: input, shape index: {}]
  %s2 = inlined_call_operand.vmem [shape: f32[128,384], index: 2, kind: input, shape index: {}]
  %s3 = inlined_call_operand.vmem [shape: f32[1,384], index: 3, kind: input, shape index: {}]
  %s4 = inlined_call_operand.vmem [shape: f32[1,128], index: 4, kind: input, shape index: {}]
  %s5 = inlined_call_operand.vmem [shape: f32[8,128], index: 5, kind: output, shape index: {}]
  %s6 = sld [smem:[#allocation0]]
  $region34: #{sequence_gru_forward.1} parent=0
    _
  %s8 = ssub.s32 1, %s6
  %s9 = scalar_select 0, %s8, %s6
  // Predicated region
  $region2: #{sequence_gru_forward.1} parent=0 // pred_check
    _
  $region3: #{sequence_gru_forward.1} parent=0 // pred_check_branch
    %11 = sbr.rel (0) target = $region5
  $region4: #{sequence_gru_forward.1} parent=0 // pred_region
    _
  $region5: #{sequence_gru_forward.1} parent=0 // pred_fallthru
    _
  // Predicated region
  $region6: #{sequence_gru_forward.1} parent=0 // pred_check
    _
  $region7: #{sequence_gru_forward.1} parent=0 // pred_check_branch
    %13 = sbr.rel (0) target = $region9
  $region8: #{sequence_gru_forward.1} parent=0 // pred_region
    _
  $region9: #{sequence_gru_forward.1} parent=0 // pred_fallthru
    _
  // Predicated region
  $region10: #{sequence_gru_forward.1} parent=0 // pred_check
    _
  $region11: #{sequence_gru_forward.1} parent=0 // pred_check_branch
    %15 = sbr.rel (0) target = $region13
  $region12: #{sequence_gru_forward.1} parent=0 // pred_region
    _
  $region13: #{sequence_gru_forward.1} parent=0 // pred_fallthru
    _
  // Predicated region
  $region14: #{sequence_gru_forward.1} parent=0 // pred_check
    _
  $region15: #{sequence_gru_forward.1} parent=0 // pred_check_branch
    %17 = sbr.rel (0) target = $region17
  $region16: #{sequence_gru_forward.1} parent=0 // pred_region
    _
  $region17: #{sequence_gru_forward.1} parent=0 // pred_fallthru
    _
  // Predicated region
  $region18: #{sequence_gru_forward.1} parent=0 // pred_check
    _
  $region19: #{sequence_gru_forward.1} parent=0 // pred_check_branch
    %19 = sbr.rel (0) target = $region21
  $region20: #{sequence_gru_forward.1} parent=0 // pred_region
    _
  $region21: #{sequence_gru_forward.1} parent=0 // pred_fallthru
    _
  %p21 = scmp.eq.s32.totalorder 0, 0
  // Predicated region
  $region22: #{sequence_gru_forward.1} parent=0 // pred_check
    %p22 = pneg %p21
  $region23: #{sequence_gru_forward.1} parent=0 // pred_check_branch
    %24 = sbr.rel (%p22) target = $region25
  $region24: #{sequence_gru_forward.1} parent=0 // pred_region
    %25 = vst [vmem:[%s5] sm:$0xff] 0.0
  $region25: #{sequence_gru_forward.1} parent=0 // pred_fallthru
    _
  %v26 = vld [vmem:[%s0] sm:$0xf]
  %v27 = vld [vmem:[%s0 + $0x4] sm:$0xf]
  %v28 = vld [vmem:[%s0 + $0x8] sm:$0xf]
  %v29 = vld [vmem:[%s0 + $0xc] sm:$0xf]
  %v30 = vld [vmem:[%s0 + $0x10] sm:$0xf]
  %v31 = vld [vmem:[%s0 + $0x14] sm:$0xf]
  %v32 = vld [vmem:[%s0 + $0x18] sm:$0xf]
  %v33 = vld [vmem:[%s0 + $0x1c] sm:$0xf]
  %v34 = vld [vmem:[%s1] sm:$0xff]
  %v35 = vld [vmem:[%s1 + $0x8] sm:$0xf]
  %v36 = vld [vmem:[%s1 + $0xc] sm:$0xff]
  %v37 = vld [vmem:[%s1 + $0x14] sm:$0xf]
  %v38 = vld [vmem:[%s3] sm:$0x7]
  %v40 = vlaneseq
  %v41 = vshrl.u32 %v40, 7
  %v42 = vsub.s32 0, %v41
  %v43 = vrot.slane %v38, %v42
  %v44 = vlaneseq
  %v45 = vshrl.u32 %v44, 7
  %v46 = vsub.s32 1, %v45
  %v47 = vrot.slane %v38, %v46
  %v48 = vlaneseq
  %v49 = vshrl.u32 %v48, 7
  %v50 = vsub.s32 2, %v49
  %v51 = vrot.slane %v38, %v50
  %v63 = vunpack.c.l.b16 %v26
  %v64 = vunpack.c.l.b16 %v27
  %v65 = vunpack.c.l.b16 %v28
  %v66 = vunpack.c.l.b16 %v29
  %v67 = vunpack.c.l.b16 %v30
  %v68 = vunpack.c.l.b16 %v31
  %v69 = vunpack.c.l.b16 %v32
  %v70 = vunpack.c.l.b16 %v33
  %v71 = vpack.c.b16 %v64, %v63
  %v72 = vpack.c.b16 %v66, %v65
  %v73 = vpack.c.b16 %v68, %v67
  %v74 = vpack.c.b16 %v70, %v69
  %v79 = vunpack.c.l.b16 %v34
  %v80 = vunpack.c.h.b16 %v34
  %v81 = vunpack.c.l.b16 %v35
  %v82 = vunpack.c.l.b16 %v36
  %v83 = vunpack.c.h.b16 %v36
  %v84 = vunpack.c.l.b16 %v37
  %v85 = vpack.c.b16 %v82, %v79
  %v86 = vpack.c.b16 %v83, %v80
  %v87 = vpack.c.b16 %v84, %v81
  %vm91 = vcmask 130048
  %v93 = vsel %vm91, %v71, 0
  %v96 = vsel %vm91, %v72, 0
  %v99 = vsel %vm91, %v73, 0
  %v102 = vsel %vm91, %v74, 0
  %104 = vmatprep.subr.bf16.mxu0 %v86
  %105 = vmatpush1.bf16.msra.mxu0 %v85
  %106 = vmatprep.subr.bf16.mxu0 0
  %107 = vmatpush1.bf16.msra.mxu0 0
  %108 = vmatprep.subr.bf16.mxu0 0
  %109 = vmatpush1.bf16.msra.mxu0 0
  %110 = vmatprep.subr.bf16.mxu0 0
  %111 = vmatpush1.bf16.msra.mxu0 0
  %112 = vmatprep.subr.bf16.mxu0 0
  %113 = vmatpush1.bf16.msra.mxu0 0
  %114 = vmatprep.subr.bf16.mxu0 0
  %115 = vmatpush1.bf16.msra.mxu0 0
  %116 = vmatprep.subr.bf16.mxu0 0
  %117 = vmatpush1.bf16.msra.mxu0 0
  %118 = vmatprep.subr.bf16.mxu0 0
  %119 = vmatpush1.bf16.msra.mxu0 0
  %120 = vmatprep.subr.bf16.mxu0 0
  %121 = vmatpush1.bf16.msra.mxu0 0
  %122 = vmatprep.subr.bf16.mxu0 0
  %123 = vmatpush1.bf16.msra.mxu0 0
  %124 = vmatprep.subr.bf16.mxu0 0
  %125 = vmatpush1.bf16.msra.mxu0 0
  %126 = vmatprep.subr.bf16.mxu0 0
  %127 = vmatpush1.bf16.msra.mxu0 0
  %128 = vmatprep.subr.bf16.mxu0 0
  %129 = vmatpush1.bf16.msra.mxu0 0
  %130 = vmatprep.subr.bf16.mxu0 0
  %131 = vmatpush1.bf16.msra.mxu0 0
  %132 = vmatprep.subr.bf16.mxu0 0
  %133 = vmatpush1.bf16.msra.mxu0 0
  %134 = vmatprep.subr.bf16.mxu0 0
  %135 = vmatpush1.bf16.msra.mxu0 0
  %136 = vmatprep.mubr.bf16.mxu0 0
  %137 = vmatmul.mubr.bf16.gmra.mrb[0].mxu0 %v93
  %v138 = vpop.f32.mrb[0].mxu0
  %v139 = vadd.f32 %v43, %v138
  %v140 = vpop.f32.mrb[0].mxu0
  %v141 = vadd.f32 %v47, %v140
  %v142 = vpop.f32.mrb[0].mxu0
  %v143 = vadd.f32 %v43, %v142
  %v144 = vpop.f32.mrb[0].mxu0
  %v145 = vadd.f32 %v47, %v144
  %146 = vmatprep.mubr.bf16.mxu0 0
  %147 = vmatmul.mubr.bf16.gmra.mrb[0].mxu0 %v96
  %v148 = vpop.f32.mrb[0].mxu0
  %v149 = vadd.f32 %v43, %v148
  %v150 = vpop.f32.mrb[0].mxu0
  %v151 = vadd.f32 %v47, %v150
  %v152 = vpop.f32.mrb[0].mxu0
  %v153 = vadd.f32 %v43, %v152
  %v154 = vpop.f32.mrb[0].mxu0
  %v155 = vadd.f32 %v47, %v154
  %156 = vmatprep.mubr.bf16.mxu0 0
  %157 = vmatmul.mubr.bf16.gmra.mrb[0].mxu0 %v99
  %v158 = vpop.f32.mrb[0].mxu0
  %v159 = vadd.f32 %v43, %v158
  %v160 = vpop.f32.mrb[0].mxu0
  %v161 = vadd.f32 %v47, %v160
  %v162 = vpop.f32.mrb[0].mxu0
  %v163 = vadd.f32 %v43, %v162
  %v164 = vpop.f32.mrb[0].mxu0
  %v165 = vadd.f32 %v47, %v164
  %166 = vmatprep.mubr.bf16.mxu0 0
  %167 = vmatmul.mubr.bf16.gmra.mrb[0].mxu0 %v102
  %v168 = vpop.f32.mrb[0].mxu0
  %v169 = vadd.f32 %v43, %v168
  %v170 = vpop.f32.mrb[0].mxu0
  %v171 = vadd.f32 %v47, %v170
  %v172 = vpop.f32.mrb[0].mxu0
  %v173 = vadd.f32 %v43, %v172
  %v174 = vpop.f32.mrb[0].mxu0
  %v175 = vadd.f32 %v47, %v174
  %176 = vdwg.mxu0
  %177 = vmatprep.subr.bf16.mxu0 0
  %178 = vmatpush1.bf16.msra.mxu0 %v87
  %179 = vmatprep.subr.bf16.mxu0 0
  %180 = vmatpush1.bf16.msra.mxu0 0
  %181 = vmatprep.subr.bf16.mxu0 0
  %182 = vmatpush1.bf16.msra.mxu0 0
  %183 = vmatprep.subr.bf16.mxu0 0
  %184 = vmatpush1.bf16.msra.mxu0 0
  %185 = vmatprep.subr.bf16.mxu0 0
  %186 = vmatpush1.bf16.msra.mxu0 0
  %187 = vmatprep.subr.bf16.mxu0 0
  %188 = vmatpush1.bf16.msra.mxu0 0
  %189 = vmatprep.subr.bf16.mxu0 0
  %190 = vmatpush1.bf16.msra.mxu0 0
  %191 = vmatprep.subr.bf16.mxu0 0
  %192 = vmatpush1.bf16.msra.mxu0 0
  %193 = vmatprep.subr.bf16.mxu0 0
  %194 = vmatpush1.bf16.msra.mxu0 0
  %195 = vmatprep.subr.bf16.mxu0 0
  %196 = vmatpush1.bf16.msra.mxu0 0
  %197 = vmatprep.subr.bf16.mxu0 0
  %198 = vmatpush1.bf16.msra.mxu0 0
  %199 = vmatprep.subr.bf16.mxu0 0
  %200 = vmatpush1.bf16.msra.mxu0 0
  %201 = vmatprep.subr.bf16.mxu0 0
  %202 = vmatpush1.bf16.msra.mxu0 0
  %203 = vmatprep.subr.bf16.mxu0 0
  %204 = vmatpush1.bf16.msra.mxu0 0
  %205 = vmatprep.subr.bf16.mxu0 0
  %206 = vmatpush1.bf16.msra.mxu0 0
  %207 = vmatprep.subr.bf16.mxu0 0
  %208 = vmatpush1.bf16.msra.mxu0 0
  %209 = vmatprep.mubr.bf16.mxu0 0
  %210 = vmatmul.mubr.bf16.gmra.mrb[0].mxu0 %v93
  %v211 = vpop.f32.mrb[0].mxu0
  %v212 = vadd.f32 %v51, %v211
  %v213 = vpop.f32.mrb[0].mxu0
  %v214 = vpop.f32.mrb[0].mxu0
  %v215 = vadd.f32 %v51, %v214
  %v216 = vpop.f32.mrb[0].mxu0
  %217 = vmatprep.mubr.bf16.mxu0 0
  %218 = vmatmul.mubr.bf16.gmra.mrb[0].mxu0 %v96
  %v219 = vpop.f32.mrb[0].mxu0
  %v220 = vadd.f32 %v51, %v219
  %v221 = vpop.f32.mrb[0].mxu0
  %v222 = vpop.f32.mrb[0].mxu0
  %v223 = vadd.f32 %v51, %v222
  %v224 = vpop.f32.mrb[0].mxu0
  %225 = vmatprep.mubr.bf16.mxu0 0
  %226 = vmatmul.mubr.bf16.gmra.mrb[0].mxu0 %v99
  %v227 = vpop.f32.mrb[0].mxu0
  %v228 = vadd.f32 %v51, %v227
  %v229 = vpop.f32.mrb[0].mxu0
  %v230 = vpop.f32.mrb[0].mxu0
  %v231 = vadd.f32 %v51, %v230
  %v232 = vpop.f32.mrb[0].mxu0
  %233 = vmatprep.mubr.bf16.mxu0 0
  %234 = vmatmul.mubr.bf16.gmra.mrb[0].mxu0 %v102
  %v235 = vpop.f32.mrb[0].mxu0
  %v236 = vadd.f32 %v51, %v235
  %v237 = vpop.f32.mrb[0].mxu0
  %v238 = vpop.f32.mrb[0].mxu0
  %v239 = vadd.f32 %v51, %v238
  %v240 = vpop.f32.mrb[0].mxu0
  %241 = vdwg.mxu0
  %242 = vst [vmem:[#allocation2] sm:$0xff] %v139
  %243 = vst [vmem:[#allocation2 + $0x8] sm:$0xff] %v141
  %244 = vst [vmem:[#allocation2 + $0x10] sm:$0xff] %v212
  %245 = vst [vmem:[#allocation2 + $0x18] sm:$0xff] %v143
  %246 = vst [vmem:[#allocation2 + $0x20] sm:$0xff] %v145
  %247 = vst [vmem:[#allocation2 + $0x28] sm:$0xff] %v215
  %248 = vst [vmem:[#allocation2 + $0x30] sm:$0xff] %v149
  %249 = vst [vmem:[#allocation2 + $0x38] sm:$0xff] %v151
  %250 = vst [vmem:[#allocation2 + $0x40] sm:$0xff] %v220
  %251 = vst [vmem:[#allocation2 + $0x48] sm:$0xff] %v153
  %252 = vst [vmem:[#allocation2 + $0x50] sm:$0xff] %v155
  %253 = vst [vmem:[#allocation2 + $0x58] sm:$0xff] %v223
  %254 = vst [vmem:[#allocation2 + $0x60] sm:$0xff] %v159
  %255 = vst [vmem:[#allocation2 + $0x68] sm:$0xff] %v161
  %256 = vst [vmem:[#allocation2 + $0x70] sm:$0xff] %v228
  %257 = vst [vmem:[#allocation2 + $0x78] sm:$0xff] %v163
  %258 = vst [vmem:[#allocation2 + $0x80] sm:$0xff] %v165
  %259 = vst [vmem:[#allocation2 + $0x88] sm:$0xff] %v231
  %260 = vst [vmem:[#allocation2 + $0x90] sm:$0xff] %v169
  %261 = vst [vmem:[#allocation2 + $0x98] sm:$0xff] %v171
  %262 = vst [vmem:[#allocation2 + $0xa0] sm:$0xff] %v236
  %263 = vst [vmem:[#allocation2 + $0xa8] sm:$0xff] %v173
  %264 = vst [vmem:[#allocation2 + $0xb0] sm:$0xff] %v175
  %265 = vst [vmem:[#allocation2 + $0xb8] sm:$0xff] %v239
  %v266 = vld [vmem:[%s2] sm:$0xff]
  %v267 = vld [vmem:[%s2 + $0x8] sm:$0xff]
  %v268 = vld [vmem:[%s2 + $0x10] sm:$0xff]
  %v269 = vld [vmem:[%s2 + $0x18] sm:$0xff]
  %v270 = vld [vmem:[%s2 + $0x20] sm:$0xff]
  %v271 = vld [vmem:[%s2 + $0x28] sm:$0xff]
  %v272 = vld [vmem:[%s2 + $0x30] sm:$0xff]
  %v273 = vld [vmem:[%s2 + $0x38] sm:$0xff]
  %v274 = vld [vmem:[%s2 + $0x40] sm:$0xff]
  %v275 = vld [vmem:[%s2 + $0x48] sm:$0xff]
  %v276 = vld [vmem:[%s2 + $0x50] sm:$0xff]
  %v277 = vld [vmem:[%s2 + $0x58] sm:$0xff]
  %v278 = vld [vmem:[%s2 + $0x60] sm:$0xff]
  %v279 = vld [vmem:[%s2 + $0x68] sm:$0xff]
  %v280 = vld [vmem:[%s2 + $0x70] sm:$0xff]
  %v281 = vld [vmem:[%s2 + $0x78] sm:$0xff]
  %v282 = vld [vmem:[%s2 + $0x80] sm:$0xff]
  %v283 = vld [vmem:[%s2 + $0x88] sm:$0xff]
  %v284 = vld [vmem:[%s2 + $0x90] sm:$0xff]
  %v285 = vld [vmem:[%s2 + $0x98] sm:$0xff]
  %v286 = vld [vmem:[%s2 + $0xa0] sm:$0xff]
  %v287 = vld [vmem:[%s2 + $0xa8] sm:$0xff]
  %v288 = vld [vmem:[%s2 + $0xb0] sm:$0xff]
  %v289 = vld [vmem:[%s2 + $0xb8] sm:$0xff]
  %v290 = vld [vmem:[%s2 + $0xc0] sm:$0xff]
  %v291 = vld [vmem:[%s2 + $0xc8] sm:$0xff]
  %v292 = vld [vmem:[%s2 + $0xd0] sm:$0xff]
  %v293 = vld [vmem:[%s2 + $0xd8] sm:$0xff]
  %v294 = vld [vmem:[%s2 + $0xe0] sm:$0xff]
  %v295 = vld [vmem:[%s2 + $0xe8] sm:$0xff]
  %v296 = vld [vmem:[%s2 + $0xf0] sm:$0xff]
  %v297 = vld [vmem:[%s2 + $0xf8] sm:$0xff]
  %v298 = vld [vmem:[%s2 + $0x100] sm:$0xff]
  %v299 = vld [vmem:[%s2 + $0x108] sm:$0xff]
  %v300 = vld [vmem:[%s2 + $0x110] sm:$0xff]
  %v301 = vld [vmem:[%s2 + $0x118] sm:$0xff]
  %v302 = vld [vmem:[%s2 + $0x120] sm:$0xff]
  %v303 = vld [vmem:[%s2 + $0x128] sm:$0xff]
  %v304 = vld [vmem:[%s2 + $0x130] sm:$0xff]
  %v305 = vld [vmem:[%s2 + $0x138] sm:$0xff]
  %v306 = vld [vmem:[%s2 + $0x140] sm:$0xff]
  %v307 = vld [vmem:[%s2 + $0x148] sm:$0xff]
  %v308 = vld [vmem:[%s2 + $0x150] sm:$0xff]
  %v309 = vld [vmem:[%s2 + $0x158] sm:$0xff]
  %v310 = vld [vmem:[%s2 + $0x160] sm:$0xff]
  %v311 = vld [vmem:[%s2 + $0x168] sm:$0xff]
  %v312 = vld [vmem:[%s2 + $0x170] sm:$0xff]
  %v313 = vld [vmem:[%s2 + $0x178] sm:$0xff]
  %v314 = vld [vmem:[%s4] sm:$0x1]
  %v316 = vlaneseq
  %v317 = vshrl.u32 %v316, 7
  %v318 = vsub.s32 0, %v317
  %v319 = vrot.slane %v314, %v318
  %v321 = vld [vmem:[%s5] sm:$0xff]
  %s322 = smul.u32 0, 3
  %s323 = smul.addr %s322, 8
  %s324 = scalar_lea.vmem [#allocation2], %s323
  %v325 = vld [vmem:[%s324] sm:$0xff]
  %v326 = vld [vmem:[%s324 + $0x8] sm:$0xff]
  %v327 = vld [vmem:[%s324 + $0x10] sm:$0xff]
  %328 = vmatprep.subr.mxu0 %v267
  %329 = vmatpush1.msra.mxu0 %v266
  %330 = vmatprep.subr.mxu0 %v270
  %331 = vmatpush1.msra.mxu0 %v269
  %332 = vmatprep.subr.mxu0 %v273
  %333 = vmatpush1.msra.mxu0 %v272
  %334 = vmatprep.subr.mxu0 %v276
  %335 = vmatpush1.msra.mxu0 %v275
  %336 = vmatprep.subr.mxu0 %v279
  %337 = vmatpush1.msra.mxu0 %v278
  %338 = vmatprep.subr.mxu0 %v282
  %339 = vmatpush1.msra.mxu0 %v281
  %340 = vmatprep.subr.mxu0 %v285
  %341 = vmatpush1.msra.mxu0 %v284
  %342 = vmatprep.subr.mxu0 %v288
  %343 = vmatpush1.msra.mxu0 %v287
  %344 = vmatprep.subr.mxu0 %v291
  %345 = vmatpush1.msra.mxu0 %v290
  %346 = vmatprep.subr.mxu0 %v294
  %347 = vmatpush1.msra.mxu0 %v293
  %348 = vmatprep.subr.mxu0 %v297
  %349 = vmatpush1.msra.mxu0 %v296
  %350 = vmatprep.subr.mxu0 %v300
  %351 = vmatpush1.msra.mxu0 %v299
  %352 = vmatprep.subr.mxu0 %v303
  %353 = vmatpush1.msra.mxu0 %v302
  %354 = vmatprep.subr.mxu0 %v306
  %355 = vmatpush1.msra.mxu0 %v305
  %356 = vmatprep.subr.mxu0 %v309
  %357 = vmatpush1.msra.mxu0 %v308
  %358 = vmatprep.subr.mxu0 %v312
  %359 = vmatpush1.msra.mxu0 %v311
  %360 = vmatprep.subr.mxu0 0.0
  %361 = vmatpush1.msra.mxu0 0.0
  %362 = vmatprep.subr.mxu0 0.0
  %363 = vmatpush1.msra.mxu0 0.0
  %364 = vmatprep.subr.mxu0 0.0
  %365 = vmatpush1.msra.mxu0 0.0
  %366 = vmatprep.subr.mxu0 0.0
  %367 = vmatpush1.msra.mxu0 0.0
  %368 = vmatprep.subr.mxu0 0.0
  %369 = vmatpush1.msra.mxu0 0.0
  %370 = vmatprep.subr.mxu0 0.0
  %371 = vmatpush1.msra.mxu0 0.0
  %372 = vmatprep.subr.mxu0 0.0
  %373 = vmatpush1.msra.mxu0 0.0
  %374 = vmatprep.subr.mxu0 0.0
  %375 = vmatpush1.msra.mxu0 0.0
  %376 = vmatprep.subr.mxu0 0.0
  %377 = vmatpush1.msra.mxu0 0.0
  %378 = vmatprep.subr.mxu0 0.0
  %379 = vmatpush1.msra.mxu0 0.0
  %380 = vmatprep.subr.mxu0 0.0
  %381 = vmatpush1.msra.mxu0 0.0
  %382 = vmatprep.subr.mxu0 0.0
  %383 = vmatpush1.msra.mxu0 0.0
  %384 = vmatprep.subr.mxu0 0.0
  %385 = vmatpush1.msra.mxu0 0.0
  %386 = vmatprep.subr.mxu0 0.0
  %387 = vmatpush1.msra.mxu0 0.0
  %388 = vmatprep.subr.mxu0 0.0
  %389 = vmatpush1.msra.mxu0 0.0
  %390 = vmatprep.subr.mxu0 0.0
  %391 = vmatpush1.msra.mxu0 0.0
  %392 = vmatprep.mubr.f32.mxu0 0.0
  %393 = vmatmul.mubr.f32.gmra.mrb[0].mxu0 %v321
  %v394 = vpop.f32.mrb[0].mxu0
  %v395 = vadd.f32 0.0, %v394
  %v396 = vpop.f32.mrb[0].mxu0
  %v397 = vadd.f32 0.0, %v396
  %398 = vdwg.mxu0
  %399 = vmatprep.subr.mxu0 0.0
  %400 = vmatpush1.msra.mxu0 %v268
  %401 = vmatprep.subr.mxu0 0.0
  %402 = vmatpush1.msra.mxu0 %v271
  %403 = vmatprep.subr.mxu0 0.0
  %404 = vmatpush1.msra.mxu0 %v274
  %405 = vmatprep.subr.mxu0 0.0
  %406 = vmatpush1.msra.mxu0 %v277
  %407 = vmatprep.subr.mxu0 0.0
  %408 = vmatpush1.msra.mxu0 %v280
  %409 = vmatprep.subr.mxu0 0.0
  %410 = vmatpush1.msra.mxu0 %v283
  %411 = vmatprep.subr.mxu0 0.0
  %412 = vmatpush1.msra.mxu0 %v286
  %413 = vmatprep.subr.mxu0 0.0
  %414 = vmatpush1.msra.mxu0 %v289
  %415 = vmatprep.subr.mxu0 0.0
  %416 = vmatpush1.msra.mxu0 %v292
  %417 = vmatprep.subr.mxu0 0.0
  %418 = vmatpush1.msra.mxu0 %v295
  %419 = vmatprep.subr.mxu0 0.0
  %420 = vmatpush1.msra.mxu0 %v298
  %421 = vmatprep.subr.mxu0 0.0
  %422 = vmatpush1.msra.mxu0 %v301
  %423 = vmatprep.subr.mxu0 0.0
  %424 = vmatpush1.msra.mxu0 %v304
  %425 = vmatprep.subr.mxu0 0.0
  %426 = vmatpush1.msra.mxu0 %v307
  %427 = vmatprep.subr.mxu0 0.0
  %428 = vmatpush1.msra.mxu0 %v310
  %429 = vmatprep.subr.mxu0 0.0
  %430 = vmatpush1.msra.mxu0 %v313
  %431 = vmatprep.subr.mxu0 0.0
  %432 = vmatpush1.msra.mxu0 0.0
  %433 = vmatprep.subr.mxu0 0.0
  %434 = vmatpush1.msra.mxu0 0.0
  %435 = vmatprep.subr.mxu0 0.0
  %436 = vmatpush1.msra.mxu0 0.0
  %437 = vmatprep.subr.mxu0 0.0
  %438 = vmatpush1.msra.mxu0 0.0
  %439 = vmatprep.subr.mxu0 0.0
  %440 = vmatpush1.msra.mxu0 0.0
  %441 = vmatprep.subr.mxu0 0.0
  %442 = vmatpush1.msra.mxu0 0.0
  %443 = vmatprep.subr.mxu0 0.0
  %444 = vmatpush1.msra.mxu0 0.0
  %445 = vmatprep.subr.mxu0 0.0
  %446 = vmatpush1.msra.mxu0 0.0
  %447 = vmatprep.subr.mxu0 0.0
  %448 = vmatpush1.msra.mxu0 0.0
  %449 = vmatprep.subr.mxu0 0.0
  %450 = vmatpush1.msra.mxu0 0.0
  %451 = vmatprep.subr.mxu0 0.0
  %452 = vmatpush1.msra.mxu0 0.0
  %453 = vmatprep.subr.mxu0 0.0
  %454 = vmatpush1.msra.mxu0 0.0
  %455 = vmatprep.subr.mxu0 0.0
  %456 = vmatpush1.msra.mxu0 0.0
  %457 = vmatprep.subr.mxu0 0.0
  %458 = vmatpush1.msra.mxu0 0.0
  %459 = vmatprep.subr.mxu0 0.0
  %460 = vmatpush1.msra.mxu0 0.0
  %461 = vmatprep.subr.mxu0 0.0
  %462 = vmatpush1.msra.mxu0 0.0
  %463 = vmatprep.mubr.f32.mxu0 0.0
  %464 = vmatmul.mubr.f32.gmra.mrb[0].mxu0 %v321
  %v465 = vpop.f32.mrb[0].mxu0
  %v466 = vadd.f32 0.0, %v465
  %v467 = vpop.f32.mrb[0].mxu0
  %468 = vdwg.mxu0
  %v469 = vadd.f32 %v325, %v395
  %v470 = vxor.u32 %v469, 2147483648
  %v471 = vmul.f32 %v470, 1.442695
  %v472 = vpow.pop %v471
  %v473 = vadd.f32 %v472, 1.0
  %v474 = vrcp.pop %v473
  %v475 = vmul.f32 1.0, %v474
  %v476 = vadd.f32 %v326, %v397
  %v477 = vxor.u32 %v476, 2147483648
  %v478 = vmul.f32 %v477, 1.442695
  %v479 = vpow.pop %v478
  %v480 = vadd.f32 %v479, 1.0
  %v481 = vrcp.pop %v480
  %v482 = vmul.f32 1.0, %v481
  %v483 = vadd.f32 %v466, %v319
  %v484 = vmul.f32 %v475, %v483
  %v485 = vadd.f32 %v327, %v484
  %v486 = vtanh.pop %v485
  %v487 = vsub.f32 %v321, %v486
  %v488 = vmul.f32 %v482, %v487
  %v489 = vadd.f32 %v486, %v488
  %s490 = smul.u32 1, 3
  %s491 = smul.addr %s490, 8
  %s492 = scalar_lea.vmem [#allocation2], %s491
  %v493 = vld [vmem:[%s492] sm:$0xff]
  %v494 = vld [vmem:[%s492 + $0x8] sm:$0xff]
  %v495 = vld [vmem:[%s492 + $0x10] sm:$0xff]
  %496 = vmatprep.subr.mxu0 %v267
  %497 = vmatpush1.msra.mxu0 %v266
  %498 = vmatprep.subr.mxu0 %v270
  %499 = vmatpush1.msra.mxu0 %v269
  %500 = vmatprep.subr.mxu0 %v273
  %501 = vmatpush1.msra.mxu0 %v272
  %502 = vmatprep.subr.mxu0 %v276
  %503 = vmatpush1.msra.mxu0 %v275
  %504 = vmatprep.subr.mxu0 %v279
  %505 = vmatpush1.msra.mxu0 %v278
  %506 = vmatprep.subr.mxu0 %v282
  %507 = vmatpush1.msra.mxu0 %v281
  %508 = vmatprep.subr.mxu0 %v285
  %509 = vmatpush1.msra.mxu0 %v284
  %510 = vmatprep.subr.mxu0 %v288
  %511 = vmatpush1.msra.mxu0 %v287
  %512 = vmatprep.subr.mxu0 %v291
  %513 = vmatpush1.msra.mxu0 %v290
  %514 = vmatprep.subr.mxu0 %v294
  %515 = vmatpush1.msra.mxu0 %v293
  %516 = vmatprep.subr.mxu0 %v297
  %517 = vmatpush1.msra.mxu0 %v296
  %518 = vmatprep.subr.mxu0 %v300
  %519 = vmatpush1.msra.mxu0 %v299
  %520 = vmatprep.subr.mxu0 %v303
  %521 = vmatpush1.msra.mxu0 %v302
  %522 = vmatprep.subr.mxu0 %v306
  %523 = vmatpush1.msra.mxu0 %v305
  %524 = vmatprep.subr.mxu0 %v309
  %525 = vmatpush1.msra.mxu0 %v308
  %526 = vmatprep.subr.mxu0 %v312
  %527 = vmatpush1.msra.mxu0 %v311
  %528 = vmatprep.subr.mxu0 0.0
  %529 = vmatpush1.msra.mxu0 0.0
  %530 = vmatprep.subr.mxu0 0.0
  %531 = vmatpush1.msra.mxu0 0.0
  %532 = vmatprep.subr.mxu0 0.0
  %533 = vmatpush1.msra.mxu0 0.0
  %534 = vmatprep.subr.mxu0 0.0
  %535 = vmatpush1.msra.mxu0 0.0
  %536 = vmatprep.subr.mxu0 0.0
  %537 = vmatpush1.msra.mxu0 0.0
  %538 = vmatprep.subr.mxu0 0.0
  %539 = vmatpush1.msra.mxu0 0.0
  %540 = vmatprep.subr.mxu0 0.0
  %541 = vmatpush1.msra.mxu0 0.0
  %542 = vmatprep.subr.mxu0 0.0
  %543 = vmatpush1.msra.mxu0 0.0
  %544 = vmatprep.subr.mxu0 0.0
  %545 = vmatpush1.msra.mxu0 0.0
  %546 = vmatprep.subr.mxu0 0.0
  %547 = vmatpush1.msra.mxu0 0.0
  %548 = vmatprep.subr.mxu0 0.0
  %549 = vmatpush1.msra.mxu0 0.0
  %550 = vmatprep.subr.mxu0 0.0
  %551 = vmatpush1.msra.mxu0 0.0
  %552 = vmatprep.subr.mxu0 0.0
  %553 = vmatpush1.msra.mxu0 0.0
  %554 = vmatprep.subr.mxu0 0.0
  %555 = vmatpush1.msra.mxu0 0.0
  %556 = vmatprep.subr.mxu0 0.0
  %557 = vmatpush1.msra.mxu0 0.0
  %558 = vmatprep.subr.mxu0 0.0
  %559 = vmatpush1.msra.mxu0 0.0
  %560 = vmatprep.mubr.f32.mxu0 0.0
  %561 = vmatmul.mubr.f32.gmra.mrb[0].mxu0 %v489
  %v562 = vpop.f32.mrb[0].mxu0
  %v563 = vadd.f32 0.0, %v562
  %v564 = vpop.f32.mrb[0].mxu0
  %v565 = vadd.f32 0.0, %v564
  %566 = vdwg.mxu0
  %567 = vmatprep.subr.mxu0 0.0
  %568 = vmatpush1.msra.mxu0 %v268
  %569 = vmatprep.subr.mxu0 0.0
  %570 = vmatpush1.msra.mxu0 %v271
  %571 = vmatprep.subr.mxu0 0.0
  %572 = vmatpush1.msra.mxu0 %v274
  %573 = vmatprep.subr.mxu0 0.0
  %574 = vmatpush1.msra.mxu0 %v277
  %575 = vmatprep.subr.mxu0 0.0
  %576 = vmatpush1.msra.mxu0 %v280
  %577 = vmatprep.subr.mxu0 0.0
  %578 = vmatpush1.msra.mxu0 %v283
  %579 = vmatprep.subr.mxu0 0.0
  %580 = vmatpush1.msra.mxu0 %v286
  %581 = vmatprep.subr.mxu0 0.0
  %582 = vmatpush1.msra.mxu0 %v289
  %583 = vmatprep.subr.mxu0 0.0
  %584 = vmatpush1.msra.mxu0 %v292
  %585 = vmatprep.subr.mxu0 0.0
  %586 = vmatpush1.msra.mxu0 %v295
  %587 = vmatprep.subr.mxu0 0.0
  %588 = vmatpush1.msra.mxu0 %v298
  %589 = vmatprep.subr.mxu0 0.0
  %590 = vmatpush1.msra.mxu0 %v301
  %591 = vmatprep.subr.mxu0 0.0
  %592 = vmatpush1.msra.mxu0 %v304
  %593 = vmatprep.subr.mxu0 0.0
  %594 = vmatpush1.msra.mxu0 %v307
  %595 = vmatprep.subr.mxu0 0.0
  %596 = vmatpush1.msra.mxu0 %v310
  %597 = vmatprep.subr.mxu0 0.0
  %598 = vmatpush1.msra.mxu0 %v313
  %599 = vmatprep.subr.mxu0 0.0
  %600 = vmatpush1.msra.mxu0 0.0
  %601 = vmatprep.subr.mxu0 0.0
  %602 = vmatpush1.msra.mxu0 0.0
  %603 = vmatprep.subr.mxu0 0.0
  %604 = vmatpush1.msra.mxu0 0.0
  %605 = vmatprep.subr.mxu0 0.0
  %606 = vmatpush1.msra.mxu0 0.0
  %607 = vmatprep.subr.mxu0 0.0
  %608 = vmatpush1.msra.mxu0 0.0
  %609 = vmatprep.subr.mxu0 0.0
  %610 = vmatpush1.msra.mxu0 0.0
  %611 = vmatprep.subr.mxu0 0.0
  %612 = vmatpush1.msra.mxu0 0.0
  %613 = vmatprep.subr.mxu0 0.0
  %614 = vmatpush1.msra.mxu0 0.0
  %615 = vmatprep.subr.mxu0 0.0
  %616 = vmatpush1.msra.mxu0 0.0
  %617 = vmatprep.subr.mxu0 0.0
  %618 = vmatpush1.msra.mxu0 0.0
  %619 = vmatprep.subr.mxu0 0.0
  %620 = vmatpush1.msra.mxu0 0.0
  %621 = vmatprep.subr.mxu0 0.0
  %622 = vmatpush1.msra.mxu0 0.0
  %623 = vmatprep.subr.mxu0 0.0
  %624 = vmatpush1.msra.mxu0 0.0
  %625 = vmatprep.subr.mxu0 0.0
  %626 = vmatpush1.msra.mxu0 0.0
  %627 = vmatprep.subr.mxu0 0.0
  %628 = vmatpush1.msra.mxu0 0.0
  %629 = vmatprep.subr.mxu0 0.0
  %630 = vmatpush1.msra.mxu0 0.0
  %631 = vmatprep.mubr.f32.mxu0 0.0
  %632 = vmatmul.mubr.f32.gmra.mrb[0].mxu0 %v489
  %v633 = vpop.f32.mrb[0].mxu0
  %v634 = vadd.f32 0.0, %v633
  %v635 = vpop.f32.mrb[0].mxu0
  %636 = vdwg.mxu0
  %v637 = vadd.f32 %v493, %v563
  %v638 = vxor.u32 %v637, 2147483648
  %v639 = vmul.f32 %v638, 1.442695
  %v640 = vpow.pop %v639
  %v641 = vadd.f32 %v640, 1.0
  %v642 = vrcp.pop %v641
  %v643 = vmul.f32 1.0, %v642
  %v644 = vadd.f32 %v494, %v565
  %v645 = vxor.u32 %v644, 2147483648
  %v646 = vmul.f32 %v645, 1.442695
  %v647 = vpow.pop %v646
  %v648 = vadd.f32 %v647, 1.0
  %v649 = vrcp.pop %v648
  %v650 = vmul.f32 1.0, %v649
  %v651 = vadd.f32 %v634, %v319
  %v652 = vmul.f32 %v643, %v651
  %v653 = vadd.f32 %v495, %v652
  %v654 = vtanh.pop %v653
  %v655 = vsub.f32 %v489, %v654
  %v656 = vmul.f32 %v650, %v655
  %v657 = vadd.f32 %v654, %v656
  %s658 = smul.u32 2, 3
  %s659 = smul.addr %s658, 8
  %s660 = scalar_lea.vmem [#allocation2], %s659
  %v661 = vld [vmem:[%s660] sm:$0xff]
  %v662 = vld [vmem:[%s660 + $0x8] sm:$0xff]
  %v663 = vld [vmem:[%s660 + $0x10] sm:$0xff]
  %664 = vmatprep.subr.mxu0 %v267
  %665 = vmatpush1.msra.mxu0 %v266
  %666 = vmatprep.subr.mxu0 %v270
  %667 = vmatpush1.msra.mxu0 %v269
  %668 = vmatprep.subr.mxu0 %v273
  %669 = vmatpush1.msra.mxu0 %v272
  %670 = vmatprep.subr.mxu0 %v276
  %671 = vmatpush1.msra.mxu0 %v275
  %672 = vmatprep.subr.mxu0 %v279
  %673 = vmatpush1.msra.mxu0 %v278
  %674 = vmatprep.subr.mxu0 %v282
  %675 = vmatpush1.msra.mxu0 %v281
  %676 = vmatprep.subr.mxu0 %v285
  %677 = vmatpush1.msra.mxu0 %v284
  %678 = vmatprep.subr.mxu0 %v288
  %679 = vmatpush1.msra.mxu0 %v287
  %680 = vmatprep.subr.mxu0 %v291
  %681 = vmatpush1.msra.mxu0 %v290
  %682 = vmatprep.subr.mxu0 %v294
  %683 = vmatpush1.msra.mxu0 %v293
  %684 = vmatprep.subr.mxu0 %v297
  %685 = vmatpush1.msra.mxu0 %v296
  %686 = vmatprep.subr.mxu0 %v300
  %687 = vmatpush1.msra.mxu0 %v299
  %688 = vmatprep.subr.mxu0 %v303
  %689 = vmatpush1.msra.mxu0 %v302
  %690 = vmatprep.subr.mxu0 %v306
  %691 = vmatpush1.msra.mxu0 %v305
  %692 = vmatprep.subr.mxu0 %v309
  %693 = vmatpush1.msra.mxu0 %v308
  %694 = vmatprep.subr.mxu0 %v312
  %695 = vmatpush1.msra.mxu0 %v311
  %696 = vmatprep.subr.mxu0 0.0
  %697 = vmatpush1.msra.mxu0 0.0
  %698 = vmatprep.subr.mxu0 0.0
  %699 = vmatpush1.msra.mxu0 0.0
  %700 = vmatprep.subr.mxu0 0.0
  %701 = vmatpush1.msra.mxu0 0.0
  %702 = vmatprep.subr.mxu0 0.0
  %703 = vmatpush1.msra.mxu0 0.0
  %704 = vmatprep.subr.mxu0 0.0
  %705 = vmatpush1.msra.mxu0 0.0
  %706 = vmatprep.subr.mxu0 0.0
  %707 = vmatpush1.msra.mxu0 0.0
  %708 = vmatprep.subr.mxu0 0.0
  %709 = vmatpush1.msra.mxu0 0.0
  %710 = vmatprep.subr.mxu0 0.0
  %711 = vmatpush1.msra.mxu0 0.0
  %712 = vmatprep.subr.mxu0 0.0
  %713 = vmatpush1.msra.mxu0 0.0
  %714 = vmatprep.subr.mxu0 0.0
  %715 = vmatpush1.msra.mxu0 0.0
  %716 = vmatprep.subr.mxu0 0.0
  %717 = vmatpush1.msra.mxu0 0.0
  %718 = vmatprep.subr.mxu0 0.0
  %719 = vmatpush1.msra.mxu0 0.0
  %720 = vmatprep.subr.mxu0 0.0
  %721 = vmatpush1.msra.mxu0 0.0
  %722 = vmatprep.subr.mxu0 0.0
  %723 = vmatpush1.msra.mxu0 0.0
  %724 = vmatprep.subr.mxu0 0.0
  %725 = vmatpush1.msra.mxu0 0.0
  %726 = vmatprep.subr.mxu0 0.0
  %727 = vmatpush1.msra.mxu0 0.0
  %728 = vmatprep.mubr.f32.mxu0 0.0
  %729 = vmatmul.mubr.f32.gmra.mrb[0].mxu0 %v657
  %v730 = vpop.f32.mrb[0].mxu0
  %v731 = vadd.f32 0.0, %v730
  %v732 = vpop.f32.mrb[0].mxu0
  %v733 = vadd.f32 0.0, %v732
  %734 = vdwg.mxu0
  %735 = vmatprep.subr.mxu0 0.0
  %736 = vmatpush1.msra.mxu0 %v268
  %737 = vmatprep.subr.mxu0 0.0
  %738 = vmatpush1.msra.mxu0 %v271
  %739 = vmatprep.subr.mxu0 0.0
  %740 = vmatpush1.msra.mxu0 %v274
  %741 = vmatprep.subr.mxu0 0.0
  %742 = vmatpush1.msra.mxu0 %v277
  %743 = vmatprep.subr.mxu0 0.0
  %744 = vmatpush1.msra.mxu0 %v280
  %745 = vmatprep.subr.mxu0 0.0
  %746 = vmatpush1.msra.mxu0 %v283
  %747 = vmatprep.subr.mxu0 0.0
  %748 = vmatpush1.msra.mxu0 %v286
  %749 = vmatprep.subr.mxu0 0.0
  %750 = vmatpush1.msra.mxu0 %v289
  %751 = vmatprep.subr.mxu0 0.0
  %752 = vmatpush1.msra.mxu0 %v292
  %753 = vmatprep.subr.mxu0 0.0
  %754 = vmatpush1.msra.mxu0 %v295
  %755 = vmatprep.subr.mxu0 0.0
  %756 = vmatpush1.msra.mxu0 %v298
  %757 = vmatprep.subr.mxu0 0.0
  %758 = vmatpush1.msra.mxu0 %v301
  %759 = vmatprep.subr.mxu0 0.0
  %760 = vmatpush1.msra.mxu0 %v304
  %761 = vmatprep.subr.mxu0 0.0
  %762 = vmatpush1.msra.mxu0 %v307
  %763 = vmatprep.subr.mxu0 0.0
  %764 = vmatpush1.msra.mxu0 %v310
  %765 = vmatprep.subr.mxu0 0.0
  %766 = vmatpush1.msra.mxu0 %v313
  %767 = vmatprep.subr.mxu0 0.0
  %768 = vmatpush1.msra.mxu0 0.0
  %769 = vmatprep.subr.mxu0 0.0
  %770 = vmatpush1.msra.mxu0 0.0
  %771 = vmatprep.subr.mxu0 0.0
  %772 = vmatpush1.msra.mxu0 0.0
  %773 = vmatprep.subr.mxu0 0.0
  %774 = vmatpush1.msra.mxu0 0.0
  %775 = vmatprep.subr.mxu0 0.0
  %776 = vmatpush1.msra.mxu0 0.0
  %777 = vmatprep.subr.mxu0 0.0
  %778 = vmatpush1.msra.mxu0 0.0
  %779 = vmatprep.subr.mxu0 0.0
  %780 = vmatpush1.msra.mxu0 0.0
  %781 = vmatprep.subr.mxu0 0.0
  %782 = vmatpush1.msra.mxu0 0.0
  %783 = vmatprep.subr.mxu0 0.0
  %784 = vmatpush1.msra.mxu0 0.0
  %785 = vmatprep.subr.mxu0 0.0
  %786 = vmatpush1.msra.mxu0 0.0
  %787 = vmatprep.subr.mxu0 0.0
  %788 = vmatpush1.msra.mxu0 0.0
  %789 = vmatprep.subr.mxu0 0.0
  %790 = vmatpush1.msra.mxu0 0.0
  %791 = vmatprep.subr.mxu0 0.0
  %792 = vmatpush1.msra.mxu0 0.0
  %793 = vmatprep.subr.mxu0 0.0
  %794 = vmatpush1.msra.mxu0 0.0
  %795 = vmatprep.subr.mxu0 0.0
  %796 = vmatpush1.msra.mxu0 0.0
  %797 = vmatprep.subr.mxu0 0.0
  %798 = vmatpush1.msra.mxu0 0.0
  %799 = vmatprep.mubr.f32.mxu0 0.0
  %800 = vmatmul.mubr.f32.gmra.mrb[0].mxu0 %v657
  %v801 = vpop.f32.mrb[0].mxu0
  %v802 = vadd.f32 0.0, %v801
  %v803 = vpop.f32.mrb[0].mxu0
  %804 = vdwg.mxu0
  %v805 = vadd.f32 %v661, %v731
  %v806 = vxor.u32 %v805, 2147483648
  %v807 = vmul.f32 %v806, 1.442695
  %v808 = vpow.pop %v807
  %v809 = vadd.f32 %v808, 1.0
  %v810 = vrcp.pop %v809
  %v811 = vmul.f32 1.0, %v810
  %v812 = vadd.f32 %v662, %v733
  %v813 = vxor.u32 %v812, 2147483648
  %v814 = vmul.f32 %v813, 1.442695
  %v815 = vpow.pop %v814
  %v816 = vadd.f32 %v815, 1.0
  %v817 = vrcp.pop %v816
  %v818 = vmul.f32 1.0, %v817
  %v819 = vadd.f32 %v802, %v319
  %v820 = vmul.f32 %v811, %v819
  %v821 = vadd.f32 %v663, %v820
  %v822 = vtanh.pop %v821
  %v823 = vsub.f32 %v657, %v822
  %v824 = vmul.f32 %v818, %v823
  %v825 = vadd.f32 %v822, %v824
  %s826 = smul.u32 3, 3
  %s827 = smul.addr %s826, 8
  %s828 = scalar_lea.vmem [#allocation2], %s827
  %v829 = vld [vmem:[%s828] sm:$0xff]
  %v830 = vld [vmem:[%s828 + $0x8] sm:$0xff]
  %v831 = vld [vmem:[%s828 + $0x10] sm:$0xff]
  %832 = vmatprep.subr.mxu0 %v267
  %833 = vmatpush1.msra.mxu0 %v266
  %834 = vmatprep.subr.mxu0 %v270
  %835 = vmatpush1.msra.mxu0 %v269
  %836 = vmatprep.subr.mxu0 %v273
  %837 = vmatpush1.msra.mxu0 %v272
  %838 = vmatprep.subr.mxu0 %v276
  %839 = vmatpush1.msra.mxu0 %v275
  %840 = vmatprep.subr.mxu0 %v279
  %841 = vmatpush1.msra.mxu0 %v278
  %842 = vmatprep.subr.mxu0 %v282
  %843 = vmatpush1.msra.mxu0 %v281
  %844 = vmatprep.subr.mxu0 %v285
  %845 = vmatpush1.msra.mxu0 %v284
  %846 = vmatprep.subr.mxu0 %v288
  %847 = vmatpush1.msra.mxu0 %v287
  %848 = vmatprep.subr.mxu0 %v291
  %849 = vmatpush1.msra.mxu0 %v290
  %850 = vmatprep.subr.mxu0 %v294
  %851 = vmatpush1.msra.mxu0 %v293
  %852 = vmatprep.subr.mxu0 %v297
  %853 = vmatpush1.msra.mxu0 %v296
  %854 = vmatprep.subr.mxu0 %v300
  %855 = vmatpush1.msra.mxu0 %v299
  %856 = vmatprep.subr.mxu0 %v303
  %857 = vmatpush1.msra.mxu0 %v302
  %858 = vmatprep.subr.mxu0 %v306
  %859 = vmatpush1.msra.mxu0 %v305
  %860 = vmatprep.subr.mxu0 %v309
  %861 = vmatpush1.msra.mxu0 %v308
  %862 = vmatprep.subr.mxu0 %v312
  %863 = vmatpush1.msra.mxu0 %v311
  %864 = vmatprep.subr.mxu0 0.0
  %865 = vmatpush1.msra.mxu0 0.0
  %866 = vmatprep.subr.mxu0 0.0
  %867 = vmatpush1.msra.mxu0 0.0
  %868 = vmatprep.subr.mxu0 0.0
  %869 = vmatpush1.msra.mxu0 0.0
  %870 = vmatprep.subr.mxu0 0.0
  %871 = vmatpush1.msra.mxu0 0.0
  %872 = vmatprep.subr.mxu0 0.0
  %873 = vmatpush1.msra.mxu0 0.0
  %874 = vmatprep.subr.mxu0 0.0
  %875 = vmatpush1.msra.mxu0 0.0
  %876 = vmatprep.subr.mxu0 0.0
  %877 = vmatpush1.msra.mxu0 0.0
  %878 = vmatprep.subr.mxu0 0.0
  %879 = vmatpush1.msra.mxu0 0.0
  %880 = vmatprep.subr.mxu0 0.0
  %881 = vmatpush1.msra.mxu0 0.0
  %882 = vmatprep.subr.mxu0 0.0
  %883 = vmatpush1.msra.mxu0 0.0
  %884 = vmatprep.subr.mxu0 0.0
  %885 = vmatpush1.msra.mxu0 0.0
  %886 = vmatprep.subr.mxu0 0.0
  %887 = vmatpush1.msra.mxu0 0.0
  %888 = vmatprep.subr.mxu0 0.0
  %889 = vmatpush1.msra.mxu0 0.0
  %890 = vmatprep.subr.mxu0 0.0
  %891 = vmatpush1.msra.mxu0 0.0
  %892 = vmatprep.subr.mxu0 0.0
  %893 = vmatpush1.msra.mxu0 0.0
  %894 = vmatprep.subr.mxu0 0.0
  %895 = vmatpush1.msra.mxu0 0.0
  %896 = vmatprep.mubr.f32.mxu0 0.0
  %897 = vmatmul.mubr.f32.gmra.mrb[0].mxu0 %v825
  %v898 = vpop.f32.mrb[0].mxu0
  %v899 = vadd.f32 0.0, %v898
  %v900 = vpop.f32.mrb[0].mxu0
  %v901 = vadd.f32 0.0, %v900
  %902 = vdwg.mxu0
  %903 = vmatprep.subr.mxu0 0.0
  %904 = vmatpush1.msra.mxu0 %v268
  %905 = vmatprep.subr.mxu0 0.0
  %906 = vmatpush1.msra.mxu0 %v271
  %907 = vmatprep.subr.mxu0 0.0
  %908 = vmatpush1.msra.mxu0 %v274
  %909 = vmatprep.subr.mxu0 0.0
  %910 = vmatpush1.msra.mxu0 %v277
  %911 = vmatprep.subr.mxu0 0.0
  %912 = vmatpush1.msra.mxu0 %v280
  %913 = vmatprep.subr.mxu0 0.0
  %914 = vmatpush1.msra.mxu0 %v283
  %915 = vmatprep.subr.mxu0 0.0
  %916 = vmatpush1.msra.mxu0 %v286
  %917 = vmatprep.subr.mxu0 0.0
  %918 = vmatpush1.msra.mxu0 %v289
  %919 = vmatprep.subr.mxu0 0.0
  %920 = vmatpush1.msra.mxu0 %v292
  %921 = vmatprep.subr.mxu0 0.0
  %922 = vmatpush1.msra.mxu0 %v295
  %923 = vmatprep.subr.mxu0 0.0
  %924 = vmatpush1.msra.mxu0 %v298
  %925 = vmatprep.subr.mxu0 0.0
  %926 = vmatpush1.msra.mxu0 %v301
  %927 = vmatprep.subr.mxu0 0.0
  %928 = vmatpush1.msra.mxu0 %v304
  %929 = vmatprep.subr.mxu0 0.0
  %930 = vmatpush1.msra.mxu0 %v307
  %931 = vmatprep.subr.mxu0 0.0
  %932 = vmatpush1.msra.mxu0 %v310
  %933 = vmatprep.subr.mxu0 0.0
  %934 = vmatpush1.msra.mxu0 %v313
  %935 = vmatprep.subr.mxu0 0.0
  %936 = vmatpush1.msra.mxu0 0.0
  %937 = vmatprep.subr.mxu0 0.0
  %938 = vmatpush1.msra.mxu0 0.0
  %939 = vmatprep.subr.mxu0 0.0
  %940 = vmatpush1.msra.mxu0 0.0
  %941 = vmatprep.subr.mxu0 0.0
  %942 = vmatpush1.msra.mxu0 0.0
  %943 = vmatprep.subr.mxu0 0.0
  %944 = vmatpush1.msra.mxu0 0.0
  %945 = vmatprep.subr.mxu0 0.0
  %946 = vmatpush1.msra.mxu0 0.0
  %947 = vmatprep.subr.mxu0 0.0
  %948 = vmatpush1.msra.mxu0 0.0
  %949 = vmatprep.subr.mxu0 0.0
  %950 = vmatpush1.msra.mxu0 0.0
  %951 = vmatprep.subr.mxu0 0.0
  %952 = vmatpush1.msra.mxu0 0.0
  %953 = vmatprep.subr.mxu0 0.0
  %954 = vmatpush1.msra.mxu0 0.0
  %955 = vmatprep.subr.mxu0 0.0
  %956 = vmatpush1.msra.mxu0 0.0
  %957 = vmatprep.subr.mxu0 0.0
  %958 = vmatpush1.msra.mxu0 0.0
  %959 = vmatprep.subr.mxu0 0.0
  %960 = vmatpush1.msra.mxu0 0.0
  %961 = vmatprep.subr.mxu0 0.0
  %962 = vmatpush1.msra.mxu0 0.0
  %963 = vmatprep.subr.mxu0 0.0
  %964 = vmatpush1.msra.mxu0 0.0
  %965 = vmatprep.subr.mxu0 0.0
  %966 = vmatpush1.msra.mxu0 0.0
  %967 = vmatprep.mubr.f32.mxu0 0.0
  %968 = vmatmul.mubr.f32.gmra.mrb[0].mxu0 %v825
  %v969 = vpop.f32.mrb[0].mxu0
  %v970 = vadd.f32 0.0, %v969
  %v971 = vpop.f32.mrb[0].mxu0
  %972 = vdwg.mxu0
  %v973 = vadd.f32 %v829, %v899
  %v974 = vxor.u32 %v973, 2147483648
  %v975 = vmul.f32 %v974, 1.442695
  %v976 = vpow.pop %v975
  %v977 = vadd.f32 %v976, 1.0
  %v978 = vrcp.pop %v977
  %v979 = vmul.f32 1.0, %v978
  %v980 = vadd.f32 %v830, %v901
  %v981 = vxor.u32 %v980, 2147483648
  %v982 = vmul.f32 %v981, 1.442695
  %v983 = vpow.pop %v982
  %v984 = vadd.f32 %v983, 1.0
  %v985 = vrcp.pop %v984
  %v986 = vmul.f32 1.0, %v985
  %v987 = vadd.f32 %v970, %v319
  %v988 = vmul.f32 %v979, %v987
  %v989 = vadd.f32 %v831, %v988
  %v990 = vtanh.pop %v989
  %v991 = vsub.f32 %v825, %v990
  %v992 = vmul.f32 %v986, %v991
  %v993 = vadd.f32 %v990, %v992
  %s994 = smul.u32 4, 3
  %s995 = smul.addr %s994, 8
  %s996 = scalar_lea.vmem [#allocation2], %s995
  %v997 = vld [vmem:[%s996] sm:$0xff]
  %v998 = vld [vmem:[%s996 + $0x8] sm:$0xff]
  %v999 = vld [vmem:[%s996 + $0x10] sm:$0xff]
  %1000 = vmatprep.subr.mxu0 %v267
  %1001 = vmatpush1.msra.mxu0 %v266
  %1002 = vmatprep.subr.mxu0 %v270
  %1003 = vmatpush1.msra.mxu0 %v269
  %1004 = vmatprep.subr.mxu0 %v273
  %1005 = vmatpush1.msra.mxu0 %v272
  %1006 = vmatprep.subr.mxu0 %v276
  %1007 = vmatpush1.msra.mxu0 %v275
  %1008 = vmatprep.subr.mxu0 %v279
  %1009 = vmatpush1.msra.mxu0 %v278
  %1010 = vmatprep.subr.mxu0 %v282
  %1011 = vmatpush1.msra.mxu0 %v281
  %1012 = vmatprep.subr.mxu0 %v285
  %1013 = vmatpush1.msra.mxu0 %v284
  %1014 = vmatprep.subr.mxu0 %v288
  %1015 = vmatpush1.msra.mxu0 %v287
  %1016 = vmatprep.subr.mxu0 %v291
  %1017 = vmatpush1.msra.mxu0 %v290
  %1018 = vmatprep.subr.mxu0 %v294
  %1019 = vmatpush1.msra.mxu0 %v293
  %1020 = vmatprep.subr.mxu0 %v297
  %1021 = vmatpush1.msra.mxu0 %v296
  %1022 = vmatprep.subr.mxu0 %v300
  %1023 = vmatpush1.msra.mxu0 %v299
  %1024 = vmatprep.subr.mxu0 %v303
  %1025 = vmatpush1.msra.mxu0 %v302
  %1026 = vmatprep.subr.mxu0 %v306
  %1027 = vmatpush1.msra.mxu0 %v305
  %1028 = vmatprep.subr.mxu0 %v309
  %1029 = vmatpush1.msra.mxu0 %v308
  %1030 = vmatprep.subr.mxu0 %v312
  %1031 = vmatpush1.msra.mxu0 %v311
  %1032 = vmatprep.subr.mxu0 0.0
  %1033 = vmatpush1.msra.mxu0 0.0
  %1034 = vmatprep.subr.mxu0 0.0
  %1035 = vmatpush1.msra.mxu0 0.0
  %1036 = vmatprep.subr.mxu0 0.0
  %1037 = vmatpush1.msra.mxu0 0.0
  %1038 = vmatprep.subr.mxu0 0.0
  %1039 = vmatpush1.msra.mxu0 0.0
  %1040 = vmatprep.subr.mxu0 0.0
  %1041 = vmatpush1.msra.mxu0 0.0
  %1042 = vmatprep.subr.mxu0 0.0
  %1043 = vmatpush1.msra.mxu0 0.0
  %1044 = vmatprep.subr.mxu0 0.0
  %1045 = vmatpush1.msra.mxu0 0.0
  %1046 = vmatprep.subr.mxu0 0.0
  %1047 = vmatpush1.msra.mxu0 0.0
  %1048 = vmatprep.subr.mxu0 0.0
  %1049 = vmatpush1.msra.mxu0 0.0
  %1050 = vmatprep.subr.mxu0 0.0
  %1051 = vmatpush1.msra.mxu0 0.0
  %1052 = vmatprep.subr.mxu0 0.0
  %1053 = vmatpush1.msra.mxu0 0.0
  %1054 = vmatprep.subr.mxu0 0.0
  %1055 = vmatpush1.msra.mxu0 0.0
  %1056 = vmatprep.subr.mxu0 0.0
  %1057 = vmatpush1.msra.mxu0 0.0
  %1058 = vmatprep.subr.mxu0 0.0
  %1059 = vmatpush1.msra.mxu0 0.0
  %1060 = vmatprep.subr.mxu0 0.0
  %1061 = vmatpush1.msra.mxu0 0.0
  %1062 = vmatprep.subr.mxu0 0.0
  %1063 = vmatpush1.msra.mxu0 0.0
  %1064 = vmatprep.mubr.f32.mxu0 0.0
  %1065 = vmatmul.mubr.f32.gmra.mrb[0].mxu0 %v993
  %v1066 = vpop.f32.mrb[0].mxu0
  %v1067 = vadd.f32 0.0, %v1066
  %v1068 = vpop.f32.mrb[0].mxu0
  %v1069 = vadd.f32 0.0, %v1068
  %1070 = vdwg.mxu0
  %1071 = vmatprep.subr.mxu0 0.0
  %1072 = vmatpush1.msra.mxu0 %v268
  %1073 = vmatprep.subr.mxu0 0.0
  %1074 = vmatpush1.msra.mxu0 %v271
  %1075 = vmatprep.subr.mxu0 0.0
  %1076 = vmatpush1.msra.mxu0 %v274
  %1077 = vmatprep.subr.mxu0 0.0
  %1078 = vmatpush1.msra.mxu0 %v277
  %1079 = vmatprep.subr.mxu0 0.0
  %1080 = vmatpush1.msra.mxu0 %v280
  %1081 = vmatprep.subr.mxu0 0.0
  %1082 = vmatpush1.msra.mxu0 %v283
  %1083 = vmatprep.subr.mxu0 0.0
  %1084 = vmatpush1.msra.mxu0 %v286
  %1085 = vmatprep.subr.mxu0 0.0
  %1086 = vmatpush1.msra.mxu0 %v289
  %1087 = vmatprep.subr.mxu0 0.0
  %1088 = vmatpush1.msra.mxu0 %v292
  %1089 = vmatprep.subr.mxu0 0.0
  %1090 = vmatpush1.msra.mxu0 %v295
  %1091 = vmatprep.subr.mxu0 0.0
  %1092 = vmatpush1.msra.mxu0 %v298
  %1093 = vmatprep.subr.mxu0 0.0
  %1094 = vmatpush1.msra.mxu0 %v301
  %1095 = vmatprep.subr.mxu0 0.0
  %1096 = vmatpush1.msra.mxu0 %v304
  %1097 = vmatprep.subr.mxu0 0.0
  %1098 = vmatpush1.msra.mxu0 %v307
  %1099 = vmatprep.subr.mxu0 0.0
  %1100 = vmatpush1.msra.mxu0 %v310
  %1101 = vmatprep.subr.mxu0 0.0
  %1102 = vmatpush1.msra.mxu0 %v313
  %1103 = vmatprep.subr.mxu0 0.0
  %1104 = vmatpush1.msra.mxu0 0.0
  %1105 = vmatprep.subr.mxu0 0.0
  %1106 = vmatpush1.msra.mxu0 0.0
  %1107 = vmatprep.subr.mxu0 0.0
  %1108 = vmatpush1.msra.mxu0 0.0
  %1109 = vmatprep.subr.mxu0 0.0
  %1110 = vmatpush1.msra.mxu0 0.0
  %1111 = vmatprep.subr.mxu0 0.0
  %1112 = vmatpush1.msra.mxu0 0.0
  %1113 = vmatprep.subr.mxu0 0.0
  %1114 = vmatpush1.msra.mxu0 0.0
  %1115 = vmatprep.subr.mxu0 0.0
  %1116 = vmatpush1.msra.mxu0 0.0
  %1117 = vmatprep.subr.mxu0 0.0
  %1118 = vmatpush1.msra.mxu0 0.0
  %1119 = vmatprep.subr.mxu0 0.0
  %1120 = vmatpush1.msra.mxu0 0.0
  %1121 = vmatprep.subr.mxu0 0.0
  %1122 = vmatpush1.msra.mxu0 0.0
  %1123 = vmatprep.subr.mxu0 0.0
  %1124 = vmatpush1.msra.mxu0 0.0
  %1125 = vmatprep.subr.mxu0 0.0
  %1126 = vmatpush1.msra.mxu0 0.0
  %1127 = vmatprep.subr.mxu0 0.0
  %1128 = vmatpush1.msra.mxu0 0.0
  %1129 = vmatprep.subr.mxu0 0.0
  %1130 = vmatpush1.msra.mxu0 0.0
  %1131 = vmatprep.subr.mxu0 0.0
  %1132 = vmatpush1.msra.mxu0 0.0
  %1133 = vmatprep.subr.mxu0 0.0
  %1134 = vmatpush1.msra.mxu0 0.0
  %1135 = vmatprep.mubr.f32.mxu0 0.0
  %1136 = vmatmul.mubr.f32.gmra.mrb[0].mxu0 %v993
  %v1137 = vpop.f32.mrb[0].mxu0
  %v1138 = vadd.f32 0.0, %v1137
  %v1139 = vpop.f32.mrb[0].mxu0
  %1140 = vdwg.mxu0
  %v1141 = vadd.f32 %v997, %v1067
  %v1142 = vxor.u32 %v1141, 2147483648
  %v1143 = vmul.f32 %v1142, 1.442695
  %v1144 = vpow.pop %v1143
  %v1145 = vadd.f32 %v1144, 1.0
  %v1146 = vrcp.pop %v1145
  %v1147 = vmul.f32 1.0, %v1146
  %v1148 = vadd.f32 %v998, %v1069
  %v1149 = vxor.u32 %v1148, 2147483648
  %v1150 = vmul.f32 %v1149, 1.442695
  %v1151 = vpow.pop %v1150
  %v1152 = vadd.f32 %v1151, 1.0
  %v1153 = vrcp.pop %v1152
  %v1154 = vmul.f32 1.0, %v1153
  %v1155 = vadd.f32 %v1138, %v319
  %v1156 = vmul.f32 %v1147, %v1155
  %v1157 = vadd.f32 %v999, %v1156
  %v1158 = vtanh.pop %v1157
  %v1159 = vsub.f32 %v993, %v1158
  %v1160 = vmul.f32 %v1154, %v1159
  %v1161 = vadd.f32 %v1158, %v1160
  %s1162 = smul.u32 5, 3
  %s1163 = smul.addr %s1162, 8
  %s1164 = scalar_lea.vmem [#allocation2], %s1163
  %v1165 = vld [vmem:[%s1164] sm:$0xff]
  %v1166 = vld [vmem:[%s1164 + $0x8] sm:$0xff]
  %v1167 = vld [vmem:[%s1164 + $0x10] sm:$0xff]
  %1168 = vmatprep.subr.mxu0 %v267
  %1169 = vmatpush1.msra.mxu0 %v266
  %1170 = vmatprep.subr.mxu0 %v270
  %1171 = vmatpush1.msra.mxu0 %v269
  %1172 = vmatprep.subr.mxu0 %v273
  %1173 = vmatpush1.msra.mxu0 %v272
  %1174 = vmatprep.subr.mxu0 %v276
  %1175 = vmatpush1.msra.mxu0 %v275
  %1176 = vmatprep.subr.mxu0 %v279
  %1177 = vmatpush1.msra.mxu0 %v278
  %1178 = vmatprep.subr.mxu0 %v282
  %1179 = vmatpush1.msra.mxu0 %v281
  %1180 = vmatprep.subr.mxu0 %v285
  %1181 = vmatpush1.msra.mxu0 %v284
  %1182 = vmatprep.subr.mxu0 %v288
  %1183 = vmatpush1.msra.mxu0 %v287
  %1184 = vmatprep.subr.mxu0 %v291
  %1185 = vmatpush1.msra.mxu0 %v290
  %1186 = vmatprep.subr.mxu0 %v294
  %1187 = vmatpush1.msra.mxu0 %v293
  %1188 = vmatprep.subr.mxu0 %v297
  %1189 = vmatpush1.msra.mxu0 %v296
  %1190 = vmatprep.subr.mxu0 %v300
  %1191 = vmatpush1.msra.mxu0 %v299
  %1192 = vmatprep.subr.mxu0 %v303
  %1193 = vmatpush1.msra.mxu0 %v302
  %1194 = vmatprep.subr.mxu0 %v306
  %1195 = vmatpush1.msra.mxu0 %v305
  %1196 = vmatprep.subr.mxu0 %v309
  %1197 = vmatpush1.msra.mxu0 %v308
  %1198 = vmatprep.subr.mxu0 %v312
  %1199 = vmatpush1.msra.mxu0 %v311
  %1200 = vmatprep.subr.mxu0 0.0
  %1201 = vmatpush1.msra.mxu0 0.0
  %1202 = vmatprep.subr.mxu0 0.0
  %1203 = vmatpush1.msra.mxu0 0.0
  %1204 = vmatprep.subr.mxu0 0.0
  %1205 = vmatpush1.msra.mxu0 0.0
  %1206 = vmatprep.subr.mxu0 0.0
  %1207 = vmatpush1.msra.mxu0 0.0
  %1208 = vmatprep.subr.mxu0 0.0
  %1209 = vmatpush1.msra.mxu0 0.0
  %1210 = vmatprep.subr.mxu0 0.0
  %1211 = vmatpush1.msra.mxu0 0.0
  %1212 = vmatprep.subr.mxu0 0.0
  %1213 = vmatpush1.msra.mxu0 0.0
  %1214 = vmatprep.subr.mxu0 0.0
  %1215 = vmatpush1.msra.mxu0 0.0
  %1216 = vmatprep.subr.mxu0 0.0
  %1217 = vmatpush1.msra.mxu0 0.0
  %1218 = vmatprep.subr.mxu0 0.0
  %1219 = vmatpush1.msra.mxu0 0.0
  %1220 = vmatprep.subr.mxu0 0.0
  %1221 = vmatpush1.msra.mxu0 0.0
  %1222 = vmatprep.subr.mxu0 0.0
  %1223 = vmatpush1.msra.mxu0 0.0
  %1224 = vmatprep.subr.mxu0 0.0
  %1225 = vmatpush1.msra.mxu0 0.0
  %1226 = vmatprep.subr.mxu0 0.0
  %1227 = vmatpush1.msra.mxu0 0.0
  %1228 = vmatprep.subr.mxu0 0.0
  %1229 = vmatpush1.msra.mxu0 0.0
  %1230 = vmatprep.subr.mxu0 0.0
  %1231 = vmatpush1.msra.mxu0 0.0
  %1232 = vmatprep.mubr.f32.mxu0 0.0
  %1233 = vmatmul.mubr.f32.gmra.mrb[0].mxu0 %v1161
  %v1234 = vpop.f32.mrb[0].mxu0
  %v1235 = vadd.f32 0.0, %v1234
  %v1236 = vpop.f32.mrb[0].mxu0
  %v1237 = vadd.f32 0.0, %v1236
  %1238 = vdwg.mxu0
  %1239 = vmatprep.subr.mxu0 0.0
  %1240 = vmatpush1.msra.mxu0 %v268
  %1241 = vmatprep.subr.mxu0 0.0
  %1242 = vmatpush1.msra.mxu0 %v271
  %1243 = vmatprep.subr.mxu0 0.0
  %1244 = vmatpush1.msra.mxu0 %v274
  %1245 = vmatprep.subr.mxu0 0.0
  %1246 = vmatpush1.msra.mxu0 %v277
  %1247 = vmatprep.subr.mxu0 0.0
  %1248 = vmatpush1.msra.mxu0 %v280
  %1249 = vmatprep.subr.mxu0 0.0
  %1250 = vmatpush1.msra.mxu0 %v283
  %1251 = vmatprep.subr.mxu0 0.0
  %1252 = vmatpush1.msra.mxu0 %v286
  %1253 = vmatprep.subr.mxu0 0.0
  %1254 = vmatpush1.msra.mxu0 %v289
  %1255 = vmatprep.subr.mxu0 0.0
  %1256 = vmatpush1.msra.mxu0 %v292
  %1257 = vmatprep.subr.mxu0 0.0
  %1258 = vmatpush1.msra.mxu0 %v295
  %1259 = vmatprep.subr.mxu0 0.0
  %1260 = vmatpush1.msra.mxu0 %v298
  %1261 = vmatprep.subr.mxu0 0.0
  %1262 = vmatpush1.msra.mxu0 %v301
  %1263 = vmatprep.subr.mxu0 0.0
  %1264 = vmatpush1.msra.mxu0 %v304
  %1265 = vmatprep.subr.mxu0 0.0
  %1266 = vmatpush1.msra.mxu0 %v307
  %1267 = vmatprep.subr.mxu0 0.0
  %1268 = vmatpush1.msra.mxu0 %v310
  %1269 = vmatprep.subr.mxu0 0.0
  %1270 = vmatpush1.msra.mxu0 %v313
  %1271 = vmatprep.subr.mxu0 0.0
  %1272 = vmatpush1.msra.mxu0 0.0
  %1273 = vmatprep.subr.mxu0 0.0
  %1274 = vmatpush1.msra.mxu0 0.0
  %1275 = vmatprep.subr.mxu0 0.0
  %1276 = vmatpush1.msra.mxu0 0.0
  %1277 = vmatprep.subr.mxu0 0.0
  %1278 = vmatpush1.msra.mxu0 0.0
  %1279 = vmatprep.subr.mxu0 0.0
  %1280 = vmatpush1.msra.mxu0 0.0
  %1281 = vmatprep.subr.mxu0 0.0
  %1282 = vmatpush1.msra.mxu0 0.0
  %1283 = vmatprep.subr.mxu0 0.0
  %1284 = vmatpush1.msra.mxu0 0.0
  %1285 = vmatprep.subr.mxu0 0.0
  %1286 = vmatpush1.msra.mxu0 0.0
  %1287 = vmatprep.subr.mxu0 0.0
  %1288 = vmatpush1.msra.mxu0 0.0
  %1289 = vmatprep.subr.mxu0 0.0
  %1290 = vmatpush1.msra.mxu0 0.0
  %1291 = vmatprep.subr.mxu0 0.0
  %1292 = vmatpush1.msra.mxu0 0.0
  %1293 = vmatprep.subr.mxu0 0.0
  %1294 = vmatpush1.msra.mxu0 0.0
  %1295 = vmatprep.subr.mxu0 0.0
  %1296 = vmatpush1.msra.mxu0 0.0
  %1297 = vmatprep.subr.mxu0 0.0
  %1298 = vmatpush1.msra.mxu0 0.0
  %1299 = vmatprep.subr.mxu0 0.0
  %1300 = vmatpush1.msra.mxu0 0.0
  %1301 = vmatprep.subr.mxu0 0.0
  %1302 = vmatpush1.msra.mxu0 0.0
  %1303 = vmatprep.mubr.f32.mxu0 0.0
  %1304 = vmatmul.mubr.f32.gmra.mrb[0].mxu0 %v1161
  %v1305 = vpop.f32.mrb[0].mxu0
  %v1306 = vadd.f32 0.0, %v1305
  %v1307 = vpop.f32.mrb[0].mxu0
  %1308 = vdwg.mxu0
  %v1309 = vadd.f32 %v1165, %v1235
  %v1310 = vxor.u32 %v1309, 2147483648
  %v1311 = vmul.f32 %v1310, 1.442695
  %v1312 = vpow.pop %v1311
  %v1313 = vadd.f32 %v1312, 1.0
  %v1314 = vrcp.pop %v1313
  %v1315 = vmul.f32 1.0, %v1314
  %v1316 = vadd.f32 %v1166, %v1237
  %v1317 = vxor.u32 %v1316, 2147483648
  %v1318 = vmul.f32 %v1317, 1.442695
  %v1319 = vpow.pop %v1318
  %v1320 = vadd.f32 %v1319, 1.0
  %v1321 = vrcp.pop %v1320
  %v1322 = vmul.f32 1.0, %v1321
  %v1323 = vadd.f32 %v1306, %v319
  %v1324 = vmul.f32 %v1315, %v1323
  %v1325 = vadd.f32 %v1167, %v1324
  %v1326 = vtanh.pop %v1325
  %v1327 = vsub.f32 %v1161, %v1326
  %v1328 = vmul.f32 %v1322, %v1327
  %v1329 = vadd.f32 %v1326, %v1328
  %s1330 = smul.u32 6, 3
  %s1331 = smul.addr %s1330, 8
  %s1332 = scalar_lea.vmem [#allocation2], %s1331
  %v1333 = vld [vmem:[%s1332] sm:$0xff]
  %v1334 = vld [vmem:[%s1332 + $0x8] sm:$0xff]
  %v1335 = vld [vmem:[%s1332 + $0x10] sm:$0xff]
  %1336 = vmatprep.subr.mxu0 %v267
  %1337 = vmatpush1.msra.mxu0 %v266
  %1338 = vmatprep.subr.mxu0 %v270
  %1339 = vmatpush1.msra.mxu0 %v269
  %1340 = vmatprep.subr.mxu0 %v273
  %1341 = vmatpush1.msra.mxu0 %v272
  %1342 = vmatprep.subr.mxu0 %v276
  %1343 = vmatpush1.msra.mxu0 %v275
  %1344 = vmatprep.subr.mxu0 %v279
  %1345 = vmatpush1.msra.mxu0 %v278
  %1346 = vmatprep.subr.mxu0 %v282
  %1347 = vmatpush1.msra.mxu0 %v281
  %1348 = vmatprep.subr.mxu0 %v285
  %1349 = vmatpush1.msra.mxu0 %v284
  %1350 = vmatprep.subr.mxu0 %v288
  %1351 = vmatpush1.msra.mxu0 %v287
  %1352 = vmatprep.subr.mxu0 %v291
  %1353 = vmatpush1.msra.mxu0 %v290
  %1354 = vmatprep.subr.mxu0 %v294
  %1355 = vmatpush1.msra.mxu0 %v293
  %1356 = vmatprep.subr.mxu0 %v297
  %1357 = vmatpush1.msra.mxu0 %v296
  %1358 = vmatprep.subr.mxu0 %v300
  %1359 = vmatpush1.msra.mxu0 %v299
  %1360 = vmatprep.subr.mxu0 %v303
  %1361 = vmatpush1.msra.mxu0 %v302
  %1362 = vmatprep.subr.mxu0 %v306
  %1363 = vmatpush1.msra.mxu0 %v305
  %1364 = vmatprep.subr.mxu0 %v309
  %1365 = vmatpush1.msra.mxu0 %v308
  %1366 = vmatprep.subr.mxu0 %v312
  %1367 = vmatpush1.msra.mxu0 %v311
  %1368 = vmatprep.subr.mxu0 0.0
  %1369 = vmatpush1.msra.mxu0 0.0
  %1370 = vmatprep.subr.mxu0 0.0
  %1371 = vmatpush1.msra.mxu0 0.0
  %1372 = vmatprep.subr.mxu0 0.0
  %1373 = vmatpush1.msra.mxu0 0.0
  %1374 = vmatprep.subr.mxu0 0.0
  %1375 = vmatpush1.msra.mxu0 0.0
  %1376 = vmatprep.subr.mxu0 0.0
  %1377 = vmatpush1.msra.mxu0 0.0
  %1378 = vmatprep.subr.mxu0 0.0
  %1379 = vmatpush1.msra.mxu0 0.0
  %1380 = vmatprep.subr.mxu0 0.0
  %1381 = vmatpush1.msra.mxu0 0.0
  %1382 = vmatprep.subr.mxu0 0.0
  %1383 = vmatpush1.msra.mxu0 0.0
  %1384 = vmatprep.subr.mxu0 0.0
  %1385 = vmatpush1.msra.mxu0 0.0
  %1386 = vmatprep.subr.mxu0 0.0
  %1387 = vmatpush1.msra.mxu0 0.0
  %1388 = vmatprep.subr.mxu0 0.0
  %1389 = vmatpush1.msra.mxu0 0.0
  %1390 = vmatprep.subr.mxu0 0.0
  %1391 = vmatpush1.msra.mxu0 0.0
  %1392 = vmatprep.subr.mxu0 0.0
  %1393 = vmatpush1.msra.mxu0 0.0
  %1394 = vmatprep.subr.mxu0 0.0
  %1395 = vmatpush1.msra.mxu0 0.0
  %1396 = vmatprep.subr.mxu0 0.0
  %1397 = vmatpush1.msra.mxu0 0.0
  %1398 = vmatprep.subr.mxu0 0.0
  %1399 = vmatpush1.msra.mxu0 0.0
  %1400 = vmatprep.mubr.f32.mxu0 0.0
  %1401 = vmatmul.mubr.f32.gmra.mrb[0].mxu0 %v1329
  %v1402 = vpop.f32.mrb[0].mxu0
  %v1403 = vadd.f32 0.0, %v1402
  %v1404 = vpop.f32.mrb[0].mxu0
  %v1405 = vadd.f32 0.0, %v1404
  %1406 = vdwg.mxu0
  %1407 = vmatprep.subr.mxu0 0.0
  %1408 = vmatpush1.msra.mxu0 %v268
  %1409 = vmatprep.subr.mxu0 0.0
  %1410 = vmatpush1.msra.mxu0 %v271
  %1411 = vmatprep.subr.mxu0 0.0
  %1412 = vmatpush1.msra.mxu0 %v274
  %1413 = vmatprep.subr.mxu0 0.0
  %1414 = vmatpush1.msra.mxu0 %v277
  %1415 = vmatprep.subr.mxu0 0.0
  %1416 = vmatpush1.msra.mxu0 %v280
  %1417 = vmatprep.subr.mxu0 0.0
  %1418 = vmatpush1.msra.mxu0 %v283
  %1419 = vmatprep.subr.mxu0 0.0
  %1420 = vmatpush1.msra.mxu0 %v286
  %1421 = vmatprep.subr.mxu0 0.0
  %1422 = vmatpush1.msra.mxu0 %v289
  %1423 = vmatprep.subr.mxu0 0.0
  %1424 = vmatpush1.msra.mxu0 %v292
  %1425 = vmatprep.subr.mxu0 0.0
  %1426 = vmatpush1.msra.mxu0 %v295
  %1427 = vmatprep.subr.mxu0 0.0
  %1428 = vmatpush1.msra.mxu0 %v298
  %1429 = vmatprep.subr.mxu0 0.0
  %1430 = vmatpush1.msra.mxu0 %v301
  %1431 = vmatprep.subr.mxu0 0.0
  %1432 = vmatpush1.msra.mxu0 %v304
  %1433 = vmatprep.subr.mxu0 0.0
  %1434 = vmatpush1.msra.mxu0 %v307
  %1435 = vmatprep.subr.mxu0 0.0
  %1436 = vmatpush1.msra.mxu0 %v310
  %1437 = vmatprep.subr.mxu0 0.0
  %1438 = vmatpush1.msra.mxu0 %v313
  %1439 = vmatprep.subr.mxu0 0.0
  %1440 = vmatpush1.msra.mxu0 0.0
  %1441 = vmatprep.subr.mxu0 0.0
  %1442 = vmatpush1.msra.mxu0 0.0
  %1443 = vmatprep.subr.mxu0 0.0
  %1444 = vmatpush1.msra.mxu0 0.0
  %1445 = vmatprep.subr.mxu0 0.0
  %1446 = vmatpush1.msra.mxu0 0.0
  %1447 = vmatprep.subr.mxu0 0.0
  %1448 = vmatpush1.msra.mxu0 0.0
  %1449 = vmatprep.subr.mxu0 0.0
  %1450 = vmatpush1.msra.mxu0 0.0
  %1451 = vmatprep.subr.mxu0 0.0
  %1452 = vmatpush1.msra.mxu0 0.0
  %1453 = vmatprep.subr.mxu0 0.0
  %1454 = vmatpush1.msra.mxu0 0.0
  %1455 = vmatprep.subr.mxu0 0.0
  %1456 = vmatpush1.msra.mxu0 0.0
  %1457 = vmatprep.subr.mxu0 0.0
  %1458 = vmatpush1.msra.mxu0 0.0
  %1459 = vmatprep.subr.mxu0 0.0
  %1460 = vmatpush1.msra.mxu0 0.0
  %1461 = vmatprep.subr.mxu0 0.0
  %1462 = vmatpush1.msra.mxu0 0.0
  %1463 = vmatprep.subr.mxu0 0.0
  %1464 = vmatpush1.msra.mxu0 0.0
  %1465 = vmatprep.subr.mxu0 0.0
  %1466 = vmatpush1.msra.mxu0 0.0
  %1467 = vmatprep.subr.mxu0 0.0
  %1468 = vmatpush1.msra.mxu0 0.0
  %1469 = vmatprep.subr.mxu0 0.0
  %1470 = vmatpush1.msra.mxu0 0.0
  %1471 = vmatprep.mubr.f32.mxu0 0.0
  %1472 = vmatmul.mubr.f32.gmra.mrb[0].mxu0 %v1329
  %v1473 = vpop.f32.mrb[0].mxu0
  %v1474 = vadd.f32 0.0, %v1473
  %v1475 = vpop.f32.mrb[0].mxu0
  %1476 = vdwg.mxu0
  %v1477 = vadd.f32 %v1333, %v1403
  %v1478 = vxor.u32 %v1477, 2147483648
  %v1479 = vmul.f32 %v1478, 1.442695
  %v1480 = vpow.pop %v1479
  %v1481 = vadd.f32 %v1480, 1.0
  %v1482 = vrcp.pop %v1481
  %v1483 = vmul.f32 1.0, %v1482
  %v1484 = vadd.f32 %v1334, %v1405
  %v1485 = vxor.u32 %v1484, 2147483648
  %v1486 = vmul.f32 %v1485, 1.442695
  %v1487 = vpow.pop %v1486
  %v1488 = vadd.f32 %v1487, 1.0
  %v1489 = vrcp.pop %v1488
  %v1490 = vmul.f32 1.0, %v1489
  %v1491 = vadd.f32 %v1474, %v319
  %v1492 = vmul.f32 %v1483, %v1491
  %v1493 = vadd.f32 %v1335, %v1492
  %v1494 = vtanh.pop %v1493
  %v1495 = vsub.f32 %v1329, %v1494
  %v1496 = vmul.f32 %v1490, %v1495
  %v1497 = vadd.f32 %v1494, %v1496
  %s1498 = smul.u32 7, 3
  %s1499 = smul.addr %s1498, 8
  %s1500 = scalar_lea.vmem [#allocation2], %s1499
  %v1501 = vld [vmem:[%s1500] sm:$0xff]
  %v1502 = vld [vmem:[%s1500 + $0x8] sm:$0xff]
  %v1503 = vld [vmem:[%s1500 + $0x10] sm:$0xff]
  %1504 = vmatprep.subr.mxu0 %v267
  %1505 = vmatpush1.msra.mxu0 %v266
  %1506 = vmatprep.subr.mxu0 %v270
  %1507 = vmatpush1.msra.mxu0 %v269
  %1508 = vmatprep.subr.mxu0 %v273
  %1509 = vmatpush1.msra.mxu0 %v272
  %1510 = vmatprep.subr.mxu0 %v276
  %1511 = vmatpush1.msra.mxu0 %v275
  %1512 = vmatprep.subr.mxu0 %v279
  %1513 = vmatpush1.msra.mxu0 %v278
  %1514 = vmatprep.subr.mxu0 %v282
  %1515 = vmatpush1.msra.mxu0 %v281
  %1516 = vmatprep.subr.mxu0 %v285
  %1517 = vmatpush1.msra.mxu0 %v284
  %1518 = vmatprep.subr.mxu0 %v288
  %1519 = vmatpush1.msra.mxu0 %v287
  %1520 = vmatprep.subr.mxu0 %v291
  %1521 = vmatpush1.msra.mxu0 %v290
  %1522 = vmatprep.subr.mxu0 %v294
  %1523 = vmatpush1.msra.mxu0 %v293
  %1524 = vmatprep.subr.mxu0 %v297
  %1525 = vmatpush1.msra.mxu0 %v296
  %1526 = vmatprep.subr.mxu0 %v300
  %1527 = vmatpush1.msra.mxu0 %v299
  %1528 = vmatprep.subr.mxu0 %v303
  %1529 = vmatpush1.msra.mxu0 %v302
  %1530 = vmatprep.subr.mxu0 %v306
  %1531 = vmatpush1.msra.mxu0 %v305
  %1532 = vmatprep.subr.mxu0 %v309
  %1533 = vmatpush1.msra.mxu0 %v308
  %1534 = vmatprep.subr.mxu0 %v312
  %1535 = vmatpush1.msra.mxu0 %v311
  %1536 = vmatprep.subr.mxu0 0.0
  %1537 = vmatpush1.msra.mxu0 0.0
  %1538 = vmatprep.subr.mxu0 0.0
  %1539 = vmatpush1.msra.mxu0 0.0
  %1540 = vmatprep.subr.mxu0 0.0
  %1541 = vmatpush1.msra.mxu0 0.0
  %1542 = vmatprep.subr.mxu0 0.0
  %1543 = vmatpush1.msra.mxu0 0.0
  %1544 = vmatprep.subr.mxu0 0.0
  %1545 = vmatpush1.msra.mxu0 0.0
  %1546 = vmatprep.subr.mxu0 0.0
  %1547 = vmatpush1.msra.mxu0 0.0
  %1548 = vmatprep.subr.mxu0 0.0
  %1549 = vmatpush1.msra.mxu0 0.0
  %1550 = vmatprep.subr.mxu0 0.0
  %1551 = vmatpush1.msra.mxu0 0.0
  %1552 = vmatprep.subr.mxu0 0.0
  %1553 = vmatpush1.msra.mxu0 0.0
  %1554 = vmatprep.subr.mxu0 0.0
  %1555 = vmatpush1.msra.mxu0 0.0
  %1556 = vmatprep.subr.mxu0 0.0
  %1557 = vmatpush1.msra.mxu0 0.0
  %1558 = vmatprep.subr.mxu0 0.0
  %1559 = vmatpush1.msra.mxu0 0.0
  %1560 = vmatprep.subr.mxu0 0.0
  %1561 = vmatpush1.msra.mxu0 0.0
  %1562 = vmatprep.subr.mxu0 0.0
  %1563 = vmatpush1.msra.mxu0 0.0
  %1564 = vmatprep.subr.mxu0 0.0
  %1565 = vmatpush1.msra.mxu0 0.0
  %1566 = vmatprep.subr.mxu0 0.0
  %1567 = vmatpush1.msra.mxu0 0.0
  %1568 = vmatprep.mubr.f32.mxu0 0.0
  %1569 = vmatmul.mubr.f32.gmra.mrb[0].mxu0 %v1497
  %v1570 = vpop.f32.mrb[0].mxu0
  %v1571 = vadd.f32 0.0, %v1570
  %v1572 = vpop.f32.mrb[0].mxu0
  %v1573 = vadd.f32 0.0, %v1572
  %1574 = vdwg.mxu0
  %1575 = vmatprep.subr.mxu0 0.0
  %1576 = vmatpush1.msra.mxu0 %v268
  %1577 = vmatprep.subr.mxu0 0.0
  %1578 = vmatpush1.msra.mxu0 %v271
  %1579 = vmatprep.subr.mxu0 0.0
  %1580 = vmatpush1.msra.mxu0 %v274
  %1581 = vmatprep.subr.mxu0 0.0
  %1582 = vmatpush1.msra.mxu0 %v277
  %1583 = vmatprep.subr.mxu0 0.0
  %1584 = vmatpush1.msra.mxu0 %v280
  %1585 = vmatprep.subr.mxu0 0.0
  %1586 = vmatpush1.msra.mxu0 %v283
  %1587 = vmatprep.subr.mxu0 0.0
  %1588 = vmatpush1.msra.mxu0 %v286
  %1589 = vmatprep.subr.mxu0 0.0
  %1590 = vmatpush1.msra.mxu0 %v289
  %1591 = vmatprep.subr.mxu0 0.0
  %1592 = vmatpush1.msra.mxu0 %v292
  %1593 = vmatprep.subr.mxu0 0.0
  %1594 = vmatpush1.msra.mxu0 %v295
  %1595 = vmatprep.subr.mxu0 0.0
  %1596 = vmatpush1.msra.mxu0 %v298
  %1597 = vmatprep.subr.mxu0 0.0
  %1598 = vmatpush1.msra.mxu0 %v301
  %1599 = vmatprep.subr.mxu0 0.0
  %1600 = vmatpush1.msra.mxu0 %v304
  %1601 = vmatprep.subr.mxu0 0.0
  %1602 = vmatpush1.msra.mxu0 %v307
  %1603 = vmatprep.subr.mxu0 0.0
  %1604 = vmatpush1.msra.mxu0 %v310
  %1605 = vmatprep.subr.mxu0 0.0
  %1606 = vmatpush1.msra.mxu0 %v313
  %1607 = vmatprep.subr.mxu0 0.0
  %1608 = vmatpush1.msra.mxu0 0.0
  %1609 = vmatprep.subr.mxu0 0.0
  %1610 = vmatpush1.msra.mxu0 0.0
  %1611 = vmatprep.subr.mxu0 0.0
  %1612 = vmatpush1.msra.mxu0 0.0
  %1613 = vmatprep.subr.mxu0 0.0
  %1614 = vmatpush1.msra.mxu0 0.0
  %1615 = vmatprep.subr.mxu0 0.0
  %1616 = vmatpush1.msra.mxu0 0.0
  %1617 = vmatprep.subr.mxu0 0.0
  %1618 = vmatpush1.msra.mxu0 0.0
  %1619 = vmatprep.subr.mxu0 0.0
  %1620 = vmatpush1.msra.mxu0 0.0
  %1621 = vmatprep.subr.mxu0 0.0
  %1622 = vmatpush1.msra.mxu0 0.0
  %1623 = vmatprep.subr.mxu0 0.0
  %1624 = vmatpush1.msra.mxu0 0.0
  %1625 = vmatprep.subr.mxu0 0.0
  %1626 = vmatpush1.msra.mxu0 0.0
  %1627 = vmatprep.subr.mxu0 0.0
  %1628 = vmatpush1.msra.mxu0 0.0
  %1629 = vmatprep.subr.mxu0 0.0
  %1630 = vmatpush1.msra.mxu0 0.0
  %1631 = vmatprep.subr.mxu0 0.0
  %1632 = vmatpush1.msra.mxu0 0.0
  %1633 = vmatprep.subr.mxu0 0.0
  %1634 = vmatpush1.msra.mxu0 0.0
  %1635 = vmatprep.subr.mxu0 0.0
  %1636 = vmatpush1.msra.mxu0 0.0
  %1637 = vmatprep.subr.mxu0 0.0
  %1638 = vmatpush1.msra.mxu0 0.0
  %1639 = vmatprep.mubr.f32.mxu0 0.0
  %1640 = vmatmul.mubr.f32.gmra.mrb[0].mxu0 %v1497
  %v1641 = vpop.f32.mrb[0].mxu0
  %v1642 = vadd.f32 0.0, %v1641
  %v1643 = vpop.f32.mrb[0].mxu0
  %1644 = vdwg.mxu0
  %v1645 = vadd.f32 %v1501, %v1571
  %v1646 = vxor.u32 %v1645, 2147483648
  %v1647 = vmul.f32 %v1646, 1.442695
  %v1648 = vpow.pop %v1647
  %v1649 = vadd.f32 %v1648, 1.0
  %v1650 = vrcp.pop %v1649
  %v1651 = vmul.f32 1.0, %v1650
  %v1652 = vadd.f32 %v1502, %v1573
  %v1653 = vxor.u32 %v1652, 2147483648
  %v1654 = vmul.f32 %v1653, 1.442695
  %v1655 = vpow.pop %v1654
  %v1656 = vadd.f32 %v1655, 1.0
  %v1657 = vrcp.pop %v1656
  %v1658 = vmul.f32 1.0, %v1657
  %v1659 = vadd.f32 %v1642, %v319
  %v1660 = vmul.f32 %v1651, %v1659
  %v1661 = vadd.f32 %v1503, %v1660
  %v1662 = vtanh.pop %v1661
  %v1663 = vsub.f32 %v1497, %v1662
  %v1664 = vmul.f32 %v1658, %v1663
  %v1665 = vadd.f32 %v1662, %v1664
  %1666 = vst [vmem:[%s5] sm:$0xff] %v1665
  // Predicated region
  $region26: #{sequence_gru_forward.1} parent=0 // pred_check
    _
  $region27: #{sequence_gru_forward.1} parent=0 // pred_check_branch
    %1668 = sbr.rel (0) target = $region29
  $region28: #{sequence_gru_forward.1} parent=0 // pred_region
    _
  $region29: #{sequence_gru_forward.1} parent=0 // pred_fallthru
    _
  // Predicated region
  $region30: #{sequence_gru_forward.1} parent=0 // pred_check
    _
  $region31: #{sequence_gru_forward.1} parent=0 // pred_check_branch
    %1670 = sbr.rel (0) target = $region33
  $region32: #{sequence_gru_forward.1} parent=0 // pred_region
    _
  $region33: #{sequence_gru_forward.1} parent=0 // pred_fallthru
    _

</llo_original>
